<compile_context>
chip_gen: v7x
topology: tpu7x:2x2x1
jax: 0.10.0
libtpu: 0.0.40
codegen_flags: <defaults>
</compile_context>

<pallas_src>
import functools

import jax
import jax.numpy as jnp
from jax.experimental import pallas as pl
from jax.experimental.pallas import tpu as pltpu


# ----------------------------------------------------------------------------
# Pallas kernel: one (TR, 128) spatial slab of one sample, all channels.
# Weights are SMEM scalars; contractions are unrolled VPU FMAs.
# ----------------------------------------------------------------------------
def _attention_gate_kernel(wgt_ref, wxt_ref, wp_ref, b_ref, bp_ref,
                           g_ref, x_ref, o_ref):
    # wgt_ref: SMEM (F_int, F_g)   folded W_g^T
    # wxt_ref: SMEM (F_int, F_l)   folded W_x^T
    # wp_ref : SMEM (F_int,)       folded psi weight
    # b_ref  : SMEM (F_int,)       folded (b_g + b_x)
    # bp_ref : SMEM (1,)           folded psi bias
    # g_ref  : VMEM (1, F_g, TR, 128)
    # x_ref  : VMEM (1, F_l, TR, 128)
    # o_ref  : VMEM (1, F_l, TR, 128)
    F_int, F_g = wgt_ref.shape
    F_l = wxt_ref.shape[1]

    g = g_ref[0].astype(jnp.float32)          # (F_g, TR, 128)
    x = x_ref[0].astype(jnp.float32)          # (F_l, TR, 128)

    # acc = sum_f wp[f] * relu( sum_c wg[c,f]*g[c] + sum_c wx[c,f]*x[c] + b[f] )
    acc = None
    for f in range(F_int):
        s = b_ref[f] + wgt_ref[f, 0] * g[0]
        for c in range(1, F_g):
            s = s + wgt_ref[f, c] * g[c]
        for c in range(F_l):
            s = s + wxt_ref[f, c] * x[c]
        r = wp_ref[f] * jnp.maximum(s, 0.0)   # ReLU then psi contraction term
        acc = r if acc is None else acc + r

    a = jax.nn.sigmoid(acc + bp_ref[0])       # (TR, 128) attention gate

    o_ref[0] = (x * a[None, :, :]).astype(o_ref.dtype)


# ----------------------------------------------------------------------------
# BN folding (eval mode) into a 1x1-conv weight/bias.
# ----------------------------------------------------------------------------
def _fold_bn(conv_w, conv_b, gamma, beta, mean, var, eps=1e-5):
    """conv_w: (C_in, C_out), conv_b: (C_out,) -> effective (C_in,C_out),(C_out,)."""
    s = gamma / jnp.sqrt(var + eps)
    return conv_w * s[None, :], (conv_b - mean) * s + beta


def _round_up(a, b):
    return (a + b - 1) // b * b


# ----------------------------------------------------------------------------
# Wrapper: layout plumbing (zero-copy reshapes + optional spatial pad).
# ----------------------------------------------------------------------------
@functools.partial(jax.jit, static_argnames=("max_rows",))
def attention_block_forward(g, x, params, max_rows=512):
    """g: (N, F_g, D, H, W), x: (N, F_l, D, H, W) -> (N, F_l, D, H, W)."""
    N, F_g, D, H, W = g.shape
    F_l = x.shape[1]
    S = D * H * W

    # Fold eval-mode BN into the 1x1 convs; pre-sum the two branch biases.
    wg, bg = _fold_bn(params["wg_w"], params["wg_b"], params["wg_gamma"],
                      params["wg_beta"], params["wg_mean"], params["wg_var"])
    wx, bx = _fold_bn(params["wx_w"], params["wx_b"], params["wx_gamma"],
                      params["wx_beta"], params["wx_mean"], params["wx_var"])
    wp, bp = _fold_bn(params["psi_w"], params["psi_b"], params["psi_gamma"],
                      params["psi_beta"], params["psi_mean"], params["psi_var"])
    F_int = wg.shape[1]

    wgt = jnp.asarray(wg.T, jnp.float32)          # (F_int, F_g)
    wxt = jnp.asarray(wx.T, jnp.float32)          # (F_int, F_l)
    wpv = jnp.asarray(wp[:, 0], jnp.float32)      # (F_int,)
    bsum = jnp.asarray(bg + bx, jnp.float32)      # (F_int,)
    bpv = jnp.asarray(bp.reshape(1), jnp.float32) # (1,)

    # ---- tile sizing: spatial axis split into rows of 128 lanes ------------
    itemsize = jnp.dtype(x.dtype).itemsize
    R = (S + 127) // 128                          # spatial rows of 128
    per_row_bytes = (F_g + 2 * F_l) * 128 * itemsize
    vmem_budget = 8 * 1024 * 1024                 # double-buffered block budget
    tr_cap = max(8, min(int(max_rows), vmem_budget // (2 * per_row_bytes)))
    tr_cap = (tr_cap // 8) * 8                    # (8,128) tiling constraint
    if R <= tr_cap:
        TR, R_pad = R, R                          # single spatial tile (== full dim)
    else:
        TR = tr_cap
        R_pad = _round_up(R, TR)
    S_pad = R_pad * 128

    # NCDHW -> (N, C, S) is a free reshape (no transpose); pad spatial if needed.
    g3 = g.reshape(N, F_g, S)
    x3 = x.reshape(N, F_l, S)
    if S_pad != S:
        pad = ((0, 0), (0, 0), (0, S_pad - S))
        g3 = jnp.pad(g3, pad)
        x3 = jnp.pad(x3, pad)
    g4 = g3.reshape(N, F_g, R_pad, 128)
    x4 = x3.reshape(N, F_l, R_pad, 128)

    smem_spec = pl.BlockSpec(memory_space=pltpu.MemorySpace.SMEM)

    out4 = pl.pallas_call(
        _attention_gate_kernel,
        out_shape=jax.ShapeDtypeStruct((N, F_l, R_pad, 128), x.dtype),
        grid_spec=pltpu.PrefetchScalarGridSpec(
            num_scalar_prefetch=0,
            grid=(N, R_pad // TR),
            in_specs=[
                smem_spec,                                    # W_g^T (folded)
                smem_spec,                                    # W_x^T (folded)
                smem_spec,                                    # W_psi (folded)
                smem_spec,                                    # b_g + b_x
                smem_spec,                                    # b_psi
                pl.BlockSpec((1, F_g, TR, 128), lambda n, j: (n, 0, j, 0)),
                pl.BlockSpec((1, F_l, TR, 128), lambda n, j: (n, 0, j, 0)),
            ],
            out_specs=pl.BlockSpec((1, F_l, TR, 128), lambda n, j: (n, 0, j, 0)),
        ),
        compiler_params=pltpu.CompilerParams(
            dimension_semantics=("parallel", "parallel")),
    )(wgt, wxt, wpv, bsum, bpv, g4, x4)

    out3 = out4.reshape(N, F_l, S_pad)
    if S_pad != S:
        out3 = out3[:, :, :S]
    return out3.reshape(N, F_l, D, H, W)


# ----------------------------------------------------------------------------
# Pure-JAX reference (direct conv + eval BN, no folding) for validation.
# ----------------------------------------------------------------------------
def _reference(g, x, params, eps=1e-5):
    def conv_bn(t, w, b, gamma, beta, mean, var):
        y = jnp.einsum("ncdhw,co->nodhw", t, w) + b[None, :, None, None, None]
        inv = gamma / jnp.sqrt(var + eps)
        return ((y - mean[None, :, None, None, None])
                * inv[None, :, None, None, None]
                + beta[None, :, None, None, None])

    g1 = conv_bn(g, params["wg_w"], params["wg_b"], params["wg_gamma"],
                 params["wg_beta"], params["wg_mean"], params["wg_var"])
    x1 = conv_bn(x, params["wx_w"], params["wx_b"], params["wx_gamma"],
                 params["wx_beta"], params["wx_mean"], params["wx_var"])
    p = jnp.maximum(g1 + x1, 0.0)
    a = jax.nn.sigmoid(conv_bn(p, params["psi_w"], params["psi_b"],
                               params["psi_gamma"], params["psi_beta"],
                               params["psi_mean"], params["psi_var"]))
    return x * a


# ----------------------------------------------------------------------------
# Deterministic parameter init (shapes from Attention_block.__init__).
# ----------------------------------------------------------------------------
def _init_params(key, F_g, F_l, F_int):
    ks = jax.random.split(key, 12)
    f32 = jnp.float32
    return {
        # W_g branch: Conv3d(F_g, F_int, 1) + BN(F_int)
        "wg_w": jax.random.normal(ks[0], (F_g, F_int), f32) * 0.1,
        "wg_b": jax.random.normal(ks[1], (F_int,), f32) * 0.1,
        "wg_gamma": 1.0 + 0.1 * jax.random.normal(ks[2], (F_int,), f32),
        "wg_beta": 0.1 * jax.random.normal(ks[3], (F_int,), f32),
        "wg_mean": 0.05 * jax.random.normal(ks[4], (F_int,), f32),
        "wg_var": 1.0 + 0.1 * jax.random.uniform(ks[5], (F_int,), f32),
        # W_x branch: Conv3d(F_l, F_int, 1) + BN(F_int)
        "wx_w": jax.random.normal(ks[6], (F_l, F_int), f32) * 0.1,
        "wx_b": jax.random.normal(ks[7], (F_int,), f32) * 0.1,
        "wx_gamma": 1.0 + 0.1 * jax.random.normal(ks[8], (F_int,), f32),
        "wx_beta": 0.1 * jax.random.normal(ks[9], (F_int,), f32),
        "wx_mean": jnp.zeros((F_int,), f32),
        "wx_var": jnp.ones((F_int,), f32),
        # psi branch: Conv3d(F_int, 1, 1) + BN(1) + Sigmoid
        "psi_w": jax.random.normal(ks[10], (F_int, 1), f32) * 0.1,
        "psi_b": jax.random.normal(ks[11], (1,), f32) * 0.1,
        "psi_gamma": jnp.ones((1,), f32),
        "psi_beta": jnp.zeros((1,), f32),
        "psi_mean": jnp.zeros((1,), f32),
        "psi_var": jnp.ones((1,), f32),
    }


if __name__ == "__main__":
    key = jax.random.PRNGKey(0)
    N, F_g, F_l, F_int = 2, 4, 4, 8

    # Case 1: spatial volume not a multiple of 128 -> exercises padding path.
    D, H, W = 5, 10, 10
    kg, kx, kp, key = jax.random.split(key, 4)
    g = jax.random.normal(kg, (N, F_g, D, H, W), jnp.float32)
    x = jax.random.normal(kx, (N, F_l, D, H, W), jnp.float32)
    params = _init_params(kp, F_g, F_l, F_int)
    out = jax.block_until_ready(attention_block_forward(g, x, params))
    ref = _reference(g, x, params)
    assert out.shape == x.shape
    assert jnp.allclose(out, ref, atol=2e-5, rtol=2e-5), "case 1 mismatch"

    # Case 2: larger volume, small max_rows -> multiple lane tiles per sample.
    D, H, W = 12, 16, 16
    kg, kx, kp, key = jax.random.split(key, 4)
    g = jax.random.normal(kg, (N, F_g, D, H, W), jnp.float32)
    x = jax.random.normal(kx, (N, F_l, D, H, W), jnp.float32)
    params = _init_params(kp, F_g, F_l, F_int)
    out = jax.block_until_ready(attention_block_forward(g, x, params, max_rows=8))
    ref = _reference(g, x, params)
    assert out.shape == x.shape
    assert jnp.allclose(out, ref, atol=2e-5, rtol=2e-5), "case 2 mismatch"

    print("KERNEL_OK")
</pallas_src>

<mosaic_0001>
module attributes {stable_mosaic.version = 11 : i64} {
  func.func @_attention_gate_kernel(%arg0: i32, %arg1: i32, %arg2: memref<8x4xf32, #tpu.memory_space<smem>>, %arg3: memref<8x4xf32, #tpu.memory_space<smem>>, %arg4: memref<8xf32, #tpu.memory_space<smem>>, %arg5: memref<8xf32, #tpu.memory_space<smem>>, %arg6: memref<1xf32, #tpu.memory_space<smem>>, %arg7: memref<1x4x4x128xf32, #tpu.memory_space<vmem>>, %arg8: memref<1x4x4x128xf32, #tpu.memory_space<vmem>>, %arg9: memref<1x4x4x128xf32, #tpu.memory_space<vmem>>) attributes {dimension_semantics = [#tpu.dimension_semantics<parallel>, #tpu.dimension_semantics<parallel>], iteration_bounds = array<i64: 2, 1>, scalar_prefetch = 0 : i64, scratch_operands = 0 : i64, tpu.core_type = #tpu.core_type<tc>, window_params = [{transform_indices = @transform_0, window_bounds = array<i64: 8, 4>}, {transform_indices = @transform_1, window_bounds = array<i64: 8, 4>}, {transform_indices = @transform_2, window_bounds = array<i64: 8>}, {transform_indices = @transform_3, window_bounds = array<i64: 8>}, {transform_indices = @transform_4, window_bounds = array<i64: 1>}, {transform_indices = @transform_5, window_bounds = array<i64: 1, 4, 4, 128>}, {transform_indices = @transform_6, window_bounds = array<i64: 1, 4, 4, 128>}, {transform_indices = @transform_7, window_bounds = array<i64: 1, 4, 4, 128>}]} {
    %c0 = arith.constant 0 : index
    %c0_0 = arith.constant 0 : index
    %c0_1 = arith.constant 0 : index
    %c0_2 = arith.constant 0 : index
    %0 = vector.load %arg7[%c0, %c0_0, %c0_1, %c0_2] : memref<1x4x4x128xf32, #tpu.memory_space<vmem>>, vector<1x4x4x128xf32>
    %1 = vector.shape_cast %0 : vector<1x4x4x128xf32> to vector<4x4x128xf32>
    %c0_3 = arith.constant 0 : index
    %c0_4 = arith.constant 0 : index
    %c0_5 = arith.constant 0 : index
    %c0_6 = arith.constant 0 : index
    %2 = vector.load %arg8[%c0_3, %c0_4, %c0_5, %c0_6] : memref<1x4x4x128xf32, #tpu.memory_space<vmem>>, vector<1x4x4x128xf32>
    %3 = vector.shape_cast %2 : vector<1x4x4x128xf32> to vector<4x4x128xf32>
    %c0_7 = arith.constant 0 : index
    %4 = memref.load %arg5[%c0_7] : memref<8xf32, #tpu.memory_space<smem>>
    %c0_8 = arith.constant 0 : index
    %c0_9 = arith.constant 0 : index
    %5 = memref.load %arg2[%c0_8, %c0_9] : memref<8x4xf32, #tpu.memory_space<smem>>
    %6 = vector.extract_strided_slice %1 {offsets = [0, 0, 0], sizes = [1, 4, 128], strides = [1, 1, 1]} : vector<4x4x128xf32> to vector<1x4x128xf32>
    %7 = vector.shape_cast %6 : vector<1x4x128xf32> to vector<4x128xf32>
    %8 = vector.broadcast %5 : f32 to vector<4x128xf32>
    %9 = arith.mulf %8, %7 : vector<4x128xf32>
    %10 = vector.broadcast %4 : f32 to vector<4x128xf32>
    %11 = arith.addf %10, %9 : vector<4x128xf32>
    %c0_10 = arith.constant 0 : index
    %c1 = arith.constant 1 : index
    %12 = memref.load %arg2[%c0_10, %c1] : memref<8x4xf32, #tpu.memory_space<smem>>
    %13 = vector.extract_strided_slice %1 {offsets = [1, 0, 0], sizes = [1, 4, 128], strides = [1, 1, 1]} : vector<4x4x128xf32> to vector<1x4x128xf32>
    %14 = vector.shape_cast %13 : vector<1x4x128xf32> to vector<4x128xf32>
    %15 = vector.broadcast %12 : f32 to vector<4x128xf32>
    %16 = arith.mulf %15, %14 : vector<4x128xf32>
    %17 = arith.addf %11, %16 : vector<4x128xf32>
    %c0_11 = arith.constant 0 : index
    %c2 = arith.constant 2 : index
    %18 = memref.load %arg2[%c0_11, %c2] : memref<8x4xf32, #tpu.memory_space<smem>>
    %19 = vector.extract_strided_slice %1 {offsets = [2, 0, 0], sizes = [1, 4, 128], strides = [1, 1, 1]} : vector<4x4x128xf32> to vector<1x4x128xf32>
    %20 = vector.shape_cast %19 : vector<1x4x128xf32> to vector<4x128xf32>
    %21 = vector.broadcast %18 : f32 to vector<4x128xf32>
    %22 = arith.mulf %21, %20 : vector<4x128xf32>
    %23 = arith.addf %17, %22 : vector<4x128xf32>
    %c0_12 = arith.constant 0 : index
    %c3 = arith.constant 3 : index
    %24 = memref.load %arg2[%c0_12, %c3] : memref<8x4xf32, #tpu.memory_space<smem>>
    %25 = vector.extract_strided_slice %1 {offsets = [3, 0, 0], sizes = [1, 4, 128], strides = [1, 1, 1]} : vector<4x4x128xf32> to vector<1x4x128xf32>
    %26 = vector.shape_cast %25 : vector<1x4x128xf32> to vector<4x128xf32>
    %27 = vector.broadcast %24 : f32 to vector<4x128xf32>
    %28 = arith.mulf %27, %26 : vector<4x128xf32>
    %29 = arith.addf %23, %28 : vector<4x128xf32>
    %c0_13 = arith.constant 0 : index
    %c0_14 = arith.constant 0 : index
    %30 = memref.load %arg3[%c0_13, %c0_14] : memref<8x4xf32, #tpu.memory_space<smem>>
    %31 = vector.extract_strided_slice %3 {offsets = [0, 0, 0], sizes = [1, 4, 128], strides = [1, 1, 1]} : vector<4x4x128xf32> to vector<1x4x128xf32>
    %32 = vector.shape_cast %31 : vector<1x4x128xf32> to vector<4x128xf32>
    %33 = vector.broadcast %30 : f32 to vector<4x128xf32>
    %34 = arith.mulf %33, %32 : vector<4x128xf32>
    %35 = arith.addf %29, %34 : vector<4x128xf32>
    %c0_15 = arith.constant 0 : index
    %c1_16 = arith.constant 1 : index
    %36 = memref.load %arg3[%c0_15, %c1_16] : memref<8x4xf32, #tpu.memory_space<smem>>
    %37 = vector.extract_strided_slice %3 {offsets = [1, 0, 0], sizes = [1, 4, 128], strides = [1, 1, 1]} : vector<4x4x128xf32> to vector<1x4x128xf32>
    %38 = vector.shape_cast %37 : vector<1x4x128xf32> to vector<4x128xf32>
    %39 = vector.broadcast %36 : f32 to vector<4x128xf32>
    %40 = arith.mulf %39, %38 : vector<4x128xf32>
    %41 = arith.addf %35, %40 : vector<4x128xf32>
    %c0_17 = arith.constant 0 : index
    %c2_18 = arith.constant 2 : index
    %42 = memref.load %arg3[%c0_17, %c2_18] : memref<8x4xf32, #tpu.memory_space<smem>>
    %43 = vector.extract_strided_slice %3 {offsets = [2, 0, 0], sizes = [1, 4, 128], strides = [1, 1, 1]} : vector<4x4x128xf32> to vector<1x4x128xf32>
    %44 = vector.shape_cast %43 : vector<1x4x128xf32> to vector<4x128xf32>
    %45 = vector.broadcast %42 : f32 to vector<4x128xf32>
    %46 = arith.mulf %45, %44 : vector<4x128xf32>
    %47 = arith.addf %41, %46 : vector<4x128xf32>
    %c0_19 = arith.constant 0 : index
    %c3_20 = arith.constant 3 : index
    %48 = memref.load %arg3[%c0_19, %c3_20] : memref<8x4xf32, #tpu.memory_space<smem>>
    %49 = vector.extract_strided_slice %3 {offsets = [3, 0, 0], sizes = [1, 4, 128], strides = [1, 1, 1]} : vector<4x4x128xf32> to vector<1x4x128xf32>
    %50 = vector.shape_cast %49 : vector<1x4x128xf32> to vector<4x128xf32>
    %51 = vector.broadcast %48 : f32 to vector<4x128xf32>
    %52 = arith.mulf %51, %50 : vector<4x128xf32>
    %53 = arith.addf %47, %52 : vector<4x128xf32>
    %c0_21 = arith.constant 0 : index
    %54 = memref.load %arg4[%c0_21] : memref<8xf32, #tpu.memory_space<smem>>
    %cst = arith.constant 0.000000e+00 : f32
    %55 = vector.broadcast %cst : f32 to vector<4x128xf32>
    %56 = arith.maximumf %53, %55 : vector<4x128xf32>
    %57 = vector.broadcast %54 : f32 to vector<4x128xf32>
    %58 = arith.mulf %57, %56 : vector<4x128xf32>
    %c1_22 = arith.constant 1 : index
    %59 = memref.load %arg5[%c1_22] : memref<8xf32, #tpu.memory_space<smem>>
    %c1_23 = arith.constant 1 : index
    %c0_24 = arith.constant 0 : index
    %60 = memref.load %arg2[%c1_23, %c0_24] : memref<8x4xf32, #tpu.memory_space<smem>>
    %61 = vector.extract_strided_slice %1 {offsets = [0, 0, 0], sizes = [1, 4, 128], strides = [1, 1, 1]} : vector<4x4x128xf32> to vector<1x4x128xf32>
    %62 = vector.shape_cast %61 : vector<1x4x128xf32> to vector<4x128xf32>
    %63 = vector.broadcast %60 : f32 to vector<4x128xf32>
    %64 = arith.mulf %63, %62 : vector<4x128xf32>
    %65 = vector.broadcast %59 : f32 to vector<4x128xf32>
    %66 = arith.addf %65, %64 : vector<4x128xf32>
    %c1_25 = arith.constant 1 : index
    %c1_26 = arith.constant 1 : index
    %67 = memref.load %arg2[%c1_25, %c1_26] : memref<8x4xf32, #tpu.memory_space<smem>>
    %68 = vector.extract_strided_slice %1 {offsets = [1, 0, 0], sizes = [1, 4, 128], strides = [1, 1, 1]} : vector<4x4x128xf32> to vector<1x4x128xf32>
    %69 = vector.shape_cast %68 : vector<1x4x128xf32> to vector<4x128xf32>
    %70 = vector.broadcast %67 : f32 to vector<4x128xf32>
    %71 = arith.mulf %70, %69 : vector<4x128xf32>
    %72 = arith.addf %66, %71 : vector<4x128xf32>
    %c1_27 = arith.constant 1 : index
    %c2_28 = arith.constant 2 : index
    %73 = memref.load %arg2[%c1_27, %c2_28] : memref<8x4xf32, #tpu.memory_space<smem>>
    %74 = vector.extract_strided_slice %1 {offsets = [2, 0, 0], sizes = [1, 4, 128], strides = [1, 1, 1]} : vector<4x4x128xf32> to vector<1x4x128xf32>
    %75 = vector.shape_cast %74 : vector<1x4x128xf32> to vector<4x128xf32>
    %76 = vector.broadcast %73 : f32 to vector<4x128xf32>
    %77 = arith.mulf %76, %75 : vector<4x128xf32>
    %78 = arith.addf %72, %77 : vector<4x128xf32>
    %c1_29 = arith.constant 1 : index
    %c3_30 = arith.constant 3 : index
    %79 = memref.load %arg2[%c1_29, %c3_30] : memref<8x4xf32, #tpu.memory_space<smem>>
    %80 = vector.extract_strided_slice %1 {offsets = [3, 0, 0], sizes = [1, 4, 128], strides = [1, 1, 1]} : vector<4x4x128xf32> to vector<1x4x128xf32>
    %81 = vector.shape_cast %80 : vector<1x4x128xf32> to vector<4x128xf32>
    %82 = vector.broadcast %79 : f32 to vector<4x128xf32>
    %83 = arith.mulf %82, %81 : vector<4x128xf32>
    %84 = arith.addf %78, %83 : vector<4x128xf32>
    %c1_31 = arith.constant 1 : index
    %c0_32 = arith.constant 0 : index
    %85 = memref.load %arg3[%c1_31, %c0_32] : memref<8x4xf32, #tpu.memory_space<smem>>
    %86 = vector.extract_strided_slice %3 {offsets = [0, 0, 0], sizes = [1, 4, 128], strides = [1, 1, 1]} : vector<4x4x128xf32> to vector<1x4x128xf32>
    %87 = vector.shape_cast %86 : vector<1x4x128xf32> to vector<4x128xf32>
    %88 = vector.broadcast %85 : f32 to vector<4x128xf32>
    %89 = arith.mulf %88, %87 : vector<4x128xf32>
    %90 = arith.addf %84, %89 : vector<4x128xf32>
    %c1_33 = arith.constant 1 : index
    %c1_34 = arith.constant 1 : index
    %91 = memref.load %arg3[%c1_33, %c1_34] : memref<8x4xf32, #tpu.memory_space<smem>>
    %92 = vector.extract_strided_slice %3 {offsets = [1, 0, 0], sizes = [1, 4, 128], strides = [1, 1, 1]} : vector<4x4x128xf32> to vector<1x4x128xf32>
    %93 = vector.shape_cast %92 : vector<1x4x128xf32> to vector<4x128xf32>
    %94 = vector.broadcast %91 : f32 to vector<4x128xf32>
    %95 = arith.mulf %94, %93 : vector<4x128xf32>
    %96 = arith.addf %90, %95 : vector<4x128xf32>
    %c1_35 = arith.constant 1 : index
    %c2_36 = arith.constant 2 : index
    %97 = memref.load %arg3[%c1_35, %c2_36] : memref<8x4xf32, #tpu.memory_space<smem>>
    %98 = vector.extract_strided_slice %3 {offsets = [2, 0, 0], sizes = [1, 4, 128], strides = [1, 1, 1]} : vector<4x4x128xf32> to vector<1x4x128xf32>
    %99 = vector.shape_cast %98 : vector<1x4x128xf32> to vector<4x128xf32>
    %100 = vector.broadcast %97 : f32 to vector<4x128xf32>
    %101 = arith.mulf %100, %99 : vector<4x128xf32>
    %102 = arith.addf %96, %101 : vector<4x128xf32>
    %c1_37 = arith.constant 1 : index
    %c3_38 = arith.constant 3 : index
    %103 = memref.load %arg3[%c1_37, %c3_38] : memref<8x4xf32, #tpu.memory_space<smem>>
    %104 = vector.extract_strided_slice %3 {offsets = [3, 0, 0], sizes = [1, 4, 128], strides = [1, 1, 1]} : vector<4x4x128xf32> to vector<1x4x128xf32>
    %105 = vector.shape_cast %104 : vector<1x4x128xf32> to vector<4x128xf32>
    %106 = vector.broadcast %103 : f32 to vector<4x128xf32>
    %107 = arith.mulf %106, %105 : vector<4x128xf32>
    %108 = arith.addf %102, %107 : vector<4x128xf32>
    %c1_39 = arith.constant 1 : index
    %109 = memref.load %arg4[%c1_39] : memref<8xf32, #tpu.memory_space<smem>>
    %cst_40 = arith.constant 0.000000e+00 : f32
    %110 = vector.broadcast %cst_40 : f32 to vector<4x128xf32>
    %111 = arith.maximumf %108, %110 : vector<4x128xf32>
    %112 = vector.broadcast %109 : f32 to vector<4x128xf32>
    %113 = arith.mulf %112, %111 : vector<4x128xf32>
    %114 = arith.addf %58, %113 : vector<4x128xf32>
    %c2_41 = arith.constant 2 : index
    %115 = memref.load %arg5[%c2_41] : memref<8xf32, #tpu.memory_space<smem>>
    %c2_42 = arith.constant 2 : index
    %c0_43 = arith.constant 0 : index
    %116 = memref.load %arg2[%c2_42, %c0_43] : memref<8x4xf32, #tpu.memory_space<smem>>
    %117 = vector.extract_strided_slice %1 {offsets = [0, 0, 0], sizes = [1, 4, 128], strides = [1, 1, 1]} : vector<4x4x128xf32> to vector<1x4x128xf32>
    %118 = vector.shape_cast %117 : vector<1x4x128xf32> to vector<4x128xf32>
    %119 = vector.broadcast %116 : f32 to vector<4x128xf32>
    %120 = arith.mulf %119, %118 : vector<4x128xf32>
    %121 = vector.broadcast %115 : f32 to vector<4x128xf32>
    %122 = arith.addf %121, %120 : vector<4x128xf32>
    %c2_44 = arith.constant 2 : index
    %c1_45 = arith.constant 1 : index
    %123 = memref.load %arg2[%c2_44, %c1_45] : memref<8x4xf32, #tpu.memory_space<smem>>
    %124 = vector.extract_strided_slice %1 {offsets = [1, 0, 0], sizes = [1, 4, 128], strides = [1, 1, 1]} : vector<4x4x128xf32> to vector<1x4x128xf32>
    %125 = vector.shape_cast %124 : vector<1x4x128xf32> to vector<4x128xf32>
    %126 = vector.broadcast %123 : f32 to vector<4x128xf32>
    %127 = arith.mulf %126, %125 : vector<4x128xf32>
    %128 = arith.addf %122, %127 : vector<4x128xf32>
    %c2_46 = arith.constant 2 : index
    %c2_47 = arith.constant 2 : index
    %129 = memref.load %arg2[%c2_46, %c2_47] : memref<8x4xf32, #tpu.memory_space<smem>>
    %130 = vector.extract_strided_slice %1 {offsets = [2, 0, 0], sizes = [1, 4, 128], strides = [1, 1, 1]} : vector<4x4x128xf32> to vector<1x4x128xf32>
    %131 = vector.shape_cast %130 : vector<1x4x128xf32> to vector<4x128xf32>
    %132 = vector.broadcast %129 : f32 to vector<4x128xf32>
    %133 = arith.mulf %132, %131 : vector<4x128xf32>
    %134 = arith.addf %128, %133 : vector<4x128xf32>
    %c2_48 = arith.constant 2 : index
    %c3_49 = arith.constant 3 : index
    %135 = memref.load %arg2[%c2_48, %c3_49] : memref<8x4xf32, #tpu.memory_space<smem>>
    %136 = vector.extract_strided_slice %1 {offsets = [3, 0, 0], sizes = [1, 4, 128], strides = [1, 1, 1]} : vector<4x4x128xf32> to vector<1x4x128xf32>
    %137 = vector.shape_cast %136 : vector<1x4x128xf32> to vector<4x128xf32>
    %138 = vector.broadcast %135 : f32 to vector<4x128xf32>
    %139 = arith.mulf %138, %137 : vector<4x128xf32>
    %140 = arith.addf %134, %139 : vector<4x128xf32>
    %c2_50 = arith.constant 2 : index
    %c0_51 = arith.constant 0 : index
    %141 = memref.load %arg3[%c2_50, %c0_51] : memref<8x4xf32, #tpu.memory_space<smem>>
    %142 = vector.extract_strided_slice %3 {offsets = [0, 0, 0], sizes = [1, 4, 128], strides = [1, 1, 1]} : vector<4x4x128xf32> to vector<1x4x128xf32>
    %143 = vector.shape_cast %142 : vector<1x4x128xf32> to vector<4x128xf32>
    %144 = vector.broadcast %141 : f32 to vector<4x128xf32>
    %145 = arith.mulf %144, %143 : vector<4x128xf32>
    %146 = arith.addf %140, %145 : vector<4x128xf32>
    %c2_52 = arith.constant 2 : index
    %c1_53 = arith.constant 1 : index
    %147 = memref.load %arg3[%c2_52, %c1_53] : memref<8x4xf32, #tpu.memory_space<smem>>
    %148 = vector.extract_strided_slice %3 {offsets = [1, 0, 0], sizes = [1, 4, 128], strides = [1, 1, 1]} : vector<4x4x128xf32> to vector<1x4x128xf32>
    %149 = vector.shape_cast %148 : vector<1x4x128xf32> to vector<4x128xf32>
    %150 = vector.broadcast %147 : f32 to vector<4x128xf32>
    %151 = arith.mulf %150, %149 : vector<4x128xf32>
    %152 = arith.addf %146, %151 : vector<4x128xf32>
    %c2_54 = arith.constant 2 : index
    %c2_55 = arith.constant 2 : index
    %153 = memref.load %arg3[%c2_54, %c2_55] : memref<8x4xf32, #tpu.memory_space<smem>>
    %154 = vector.extract_strided_slice %3 {offsets = [2, 0, 0], sizes = [1, 4, 128], strides = [1, 1, 1]} : vector<4x4x128xf32> to vector<1x4x128xf32>
    %155 = vector.shape_cast %154 : vector<1x4x128xf32> to vector<4x128xf32>
    %156 = vector.broadcast %153 : f32 to vector<4x128xf32>
    %157 = arith.mulf %156, %155 : vector<4x128xf32>
    %158 = arith.addf %152, %157 : vector<4x128xf32>
    %c2_56 = arith.constant 2 : index
    %c3_57 = arith.constant 3 : index
    %159 = memref.load %arg3[%c2_56, %c3_57] : memref<8x4xf32, #tpu.memory_space<smem>>
    %160 = vector.extract_strided_slice %3 {offsets = [3, 0, 0], sizes = [1, 4, 128], strides = [1, 1, 1]} : vector<4x4x128xf32> to vector<1x4x128xf32>
    %161 = vector.shape_cast %160 : vector<1x4x128xf32> to vector<4x128xf32>
    %162 = vector.broadcast %159 : f32 to vector<4x128xf32>
    %163 = arith.mulf %162, %161 : vector<4x128xf32>
    %164 = arith.addf %158, %163 : vector<4x128xf32>
    %c2_58 = arith.constant 2 : index
    %165 = memref.load %arg4[%c2_58] : memref<8xf32, #tpu.memory_space<smem>>
    %cst_59 = arith.constant 0.000000e+00 : f32
    %166 = vector.broadcast %cst_59 : f32 to vector<4x128xf32>
    %167 = arith.maximumf %164, %166 : vector<4x128xf32>
    %168 = vector.broadcast %165 : f32 to vector<4x128xf32>
    %169 = arith.mulf %168, %167 : vector<4x128xf32>
    %170 = arith.addf %114, %169 : vector<4x128xf32>
    %c3_60 = arith.constant 3 : index
    %171 = memref.load %arg5[%c3_60] : memref<8xf32, #tpu.memory_space<smem>>
    %c3_61 = arith.constant 3 : index
    %c0_62 = arith.constant 0 : index
    %172 = memref.load %arg2[%c3_61, %c0_62] : memref<8x4xf32, #tpu.memory_space<smem>>
    %173 = vector.extract_strided_slice %1 {offsets = [0, 0, 0], sizes = [1, 4, 128], strides = [1, 1, 1]} : vector<4x4x128xf32> to vector<1x4x128xf32>
    %174 = vector.shape_cast %173 : vector<1x4x128xf32> to vector<4x128xf32>
    %175 = vector.broadcast %172 : f32 to vector<4x128xf32>
    %176 = arith.mulf %175, %174 : vector<4x128xf32>
    %177 = vector.broadcast %171 : f32 to vector<4x128xf32>
    %178 = arith.addf %177, %176 : vector<4x128xf32>
    %c3_63 = arith.constant 3 : index
    %c1_64 = arith.constant 1 : index
    %179 = memref.load %arg2[%c3_63, %c1_64] : memref<8x4xf32, #tpu.memory_space<smem>>
    %180 = vector.extract_strided_slice %1 {offsets = [1, 0, 0], sizes = [1, 4, 128], strides = [1, 1, 1]} : vector<4x4x128xf32> to vector<1x4x128xf32>
    %181 = vector.shape_cast %180 : vector<1x4x128xf32> to vector<4x128xf32>
    %182 = vector.broadcast %179 : f32 to vector<4x128xf32>
    %183 = arith.mulf %182, %181 : vector<4x128xf32>
    %184 = arith.addf %178, %183 : vector<4x128xf32>
    %c3_65 = arith.constant 3 : index
    %c2_66 = arith.constant 2 : index
    %185 = memref.load %arg2[%c3_65, %c2_66] : memref<8x4xf32, #tpu.memory_space<smem>>
    %186 = vector.extract_strided_slice %1 {offsets = [2, 0, 0], sizes = [1, 4, 128], strides = [1, 1, 1]} : vector<4x4x128xf32> to vector<1x4x128xf32>
    %187 = vector.shape_cast %186 : vector<1x4x128xf32> to vector<4x128xf32>
    %188 = vector.broadcast %185 : f32 to vector<4x128xf32>
    %189 = arith.mulf %188, %187 : vector<4x128xf32>
    %190 = arith.addf %184, %189 : vector<4x128xf32>
    %c3_67 = arith.constant 3 : index
    %c3_68 = arith.constant 3 : index
    %191 = memref.load %arg2[%c3_67, %c3_68] : memref<8x4xf32, #tpu.memory_space<smem>>
    %192 = vector.extract_strided_slice %1 {offsets = [3, 0, 0], sizes = [1, 4, 128], strides = [1, 1, 1]} : vector<4x4x128xf32> to vector<1x4x128xf32>
    %193 = vector.shape_cast %192 : vector<1x4x128xf32> to vector<4x128xf32>
    %194 = vector.broadcast %191 : f32 to vector<4x128xf32>
    %195 = arith.mulf %194, %193 : vector<4x128xf32>
    %196 = arith.addf %190, %195 : vector<4x128xf32>
    %c3_69 = arith.constant 3 : index
    %c0_70 = arith.constant 0 : index
    %197 = memref.load %arg3[%c3_69, %c0_70] : memref<8x4xf32, #tpu.memory_space<smem>>
    %198 = vector.extract_strided_slice %3 {offsets = [0, 0, 0], sizes = [1, 4, 128], strides = [1, 1, 1]} : vector<4x4x128xf32> to vector<1x4x128xf32>
    %199 = vector.shape_cast %198 : vector<1x4x128xf32> to vector<4x128xf32>
    %200 = vector.broadcast %197 : f32 to vector<4x128xf32>
    %201 = arith.mulf %200, %199 : vector<4x128xf32>
    %202 = arith.addf %196, %201 : vector<4x128xf32>
    %c3_71 = arith.constant 3 : index
    %c1_72 = arith.constant 1 : index
    %203 = memref.load %arg3[%c3_71, %c1_72] : memref<8x4xf32, #tpu.memory_space<smem>>
    %204 = vector.extract_strided_slice %3 {offsets = [1, 0, 0], sizes = [1, 4, 128], strides = [1, 1, 1]} : vector<4x4x128xf32> to vector<1x4x128xf32>
    %205 = vector.shape_cast %204 : vector<1x4x128xf32> to vector<4x128xf32>
    %206 = vector.broadcast %203 : f32 to vector<4x128xf32>
    %207 = arith.mulf %206, %205 : vector<4x128xf32>
    %208 = arith.addf %202, %207 : vector<4x128xf32>
    %c3_73 = arith.constant 3 : index
    %c2_74 = arith.constant 2 : index
    %209 = memref.load %arg3[%c3_73, %c2_74] : memref<8x4xf32, #tpu.memory_space<smem>>
    %210 = vector.extract_strided_slice %3 {offsets = [2, 0, 0], sizes = [1, 4, 128], strides = [1, 1, 1]} : vector<4x4x128xf32> to vector<1x4x128xf32>
    %211 = vector.shape_cast %210 : vector<1x4x128xf32> to vector<4x128xf32>
    %212 = vector.broadcast %209 : f32 to vector<4x128xf32>
    %213 = arith.mulf %212, %211 : vector<4x128xf32>
    %214 = arith.addf %208, %213 : vector<4x128xf32>
    %c3_75 = arith.constant 3 : index
    %c3_76 = arith.constant 3 : index
    %215 = memref.load %arg3[%c3_75, %c3_76] : memref<8x4xf32, #tpu.memory_space<smem>>
    %216 = vector.extract_strided_slice %3 {offsets = [3, 0, 0], sizes = [1, 4, 128], strides = [1, 1, 1]} : vector<4x4x128xf32> to vector<1x4x128xf32>
    %217 = vector.shape_cast %216 : vector<1x4x128xf32> to vector<4x128xf32>
    %218 = vector.broadcast %215 : f32 to vector<4x128xf32>
    %219 = arith.mulf %218, %217 : vector<4x128xf32>
    %220 = arith.addf %214, %219 : vector<4x128xf32>
    %c3_77 = arith.constant 3 : index
    %221 = memref.load %arg4[%c3_77] : memref<8xf32, #tpu.memory_space<smem>>
    %cst_78 = arith.constant 0.000000e+00 : f32
    %222 = vector.broadcast %cst_78 : f32 to vector<4x128xf32>
    %223 = arith.maximumf %220, %222 : vector<4x128xf32>
    %224 = vector.broadcast %221 : f32 to vector<4x128xf32>
    %225 = arith.mulf %224, %223 : vector<4x128xf32>
    %226 = arith.addf %170, %225 : vector<4x128xf32>
    %c4 = arith.constant 4 : index
    %227 = memref.load %arg5[%c4] : memref<8xf32, #tpu.memory_space<smem>>
    %c4_79 = arith.constant 4 : index
    %c0_80 = arith.constant 0 : index
    %228 = memref.load %arg2[%c4_79, %c0_80] : memref<8x4xf32, #tpu.memory_space<smem>>
    %229 = vector.extract_strided_slice %1 {offsets = [0, 0, 0], sizes = [1, 4, 128], strides = [1, 1, 1]} : vector<4x4x128xf32> to vector<1x4x128xf32>
    %230 = vector.shape_cast %229 : vector<1x4x128xf32> to vector<4x128xf32>
    %231 = vector.broadcast %228 : f32 to vector<4x128xf32>
    %232 = arith.mulf %231, %230 : vector<4x128xf32>
    %233 = vector.broadcast %227 : f32 to vector<4x128xf32>
    %234 = arith.addf %233, %232 : vector<4x128xf32>
    %c4_81 = arith.constant 4 : index
    %c1_82 = arith.constant 1 : index
    %235 = memref.load %arg2[%c4_81, %c1_82] : memref<8x4xf32, #tpu.memory_space<smem>>
    %236 = vector.extract_strided_slice %1 {offsets = [1, 0, 0], sizes = [1, 4, 128], strides = [1, 1, 1]} : vector<4x4x128xf32> to vector<1x4x128xf32>
    %237 = vector.shape_cast %236 : vector<1x4x128xf32> to vector<4x128xf32>
    %238 = vector.broadcast %235 : f32 to vector<4x128xf32>
    %239 = arith.mulf %238, %237 : vector<4x128xf32>
    %240 = arith.addf %234, %239 : vector<4x128xf32>
    %c4_83 = arith.constant 4 : index
    %c2_84 = arith.constant 2 : index
    %241 = memref.load %arg2[%c4_83, %c2_84] : memref<8x4xf32, #tpu.memory_space<smem>>
    %242 = vector.extract_strided_slice %1 {offsets = [2, 0, 0], sizes = [1, 4, 128], strides = [1, 1, 1]} : vector<4x4x128xf32> to vector<1x4x128xf32>
    %243 = vector.shape_cast %242 : vector<1x4x128xf32> to vector<4x128xf32>
    %244 = vector.broadcast %241 : f32 to vector<4x128xf32>
    %245 = arith.mulf %244, %243 : vector<4x128xf32>
    %246 = arith.addf %240, %245 : vector<4x128xf32>
    %c4_85 = arith.constant 4 : index
    %c3_86 = arith.constant 3 : index
    %247 = memref.load %arg2[%c4_85, %c3_86] : memref<8x4xf32, #tpu.memory_space<smem>>
    %248 = vector.extract_strided_slice %1 {offsets = [3, 0, 0], sizes = [1, 4, 128], strides = [1, 1, 1]} : vector<4x4x128xf32> to vector<1x4x128xf32>
    %249 = vector.shape_cast %248 : vector<1x4x128xf32> to vector<4x128xf32>
    %250 = vector.broadcast %247 : f32 to vector<4x128xf32>
    %251 = arith.mulf %250, %249 : vector<4x128xf32>
    %252 = arith.addf %246, %251 : vector<4x128xf32>
    %c4_87 = arith.constant 4 : index
    %c0_88 = arith.constant 0 : index
    %253 = memref.load %arg3[%c4_87, %c0_88] : memref<8x4xf32, #tpu.memory_space<smem>>
    %254 = vector.extract_strided_slice %3 {offsets = [0, 0, 0], sizes = [1, 4, 128], strides = [1, 1, 1]} : vector<4x4x128xf32> to vector<1x4x128xf32>
    %255 = vector.shape_cast %254 : vector<1x4x128xf32> to vector<4x128xf32>
    %256 = vector.broadcast %253 : f32 to vector<4x128xf32>
    %257 = arith.mulf %256, %255 : vector<4x128xf32>
    %258 = arith.addf %252, %257 : vector<4x128xf32>
    %c4_89 = arith.constant 4 : index
    %c1_90 = arith.constant 1 : index
    %259 = memref.load %arg3[%c4_89, %c1_90] : memref<8x4xf32, #tpu.memory_space<smem>>
    %260 = vector.extract_strided_slice %3 {offsets = [1, 0, 0], sizes = [1, 4, 128], strides = [1, 1, 1]} : vector<4x4x128xf32> to vector<1x4x128xf32>
    %261 = vector.shape_cast %260 : vector<1x4x128xf32> to vector<4x128xf32>
    %262 = vector.broadcast %259 : f32 to vector<4x128xf32>
    %263 = arith.mulf %262, %261 : vector<4x128xf32>
    %264 = arith.addf %258, %263 : vector<4x128xf32>
    %c4_91 = arith.constant 4 : index
    %c2_92 = arith.constant 2 : index
    %265 = memref.load %arg3[%c4_91, %c2_92] : memref<8x4xf32, #tpu.memory_space<smem>>
    %266 = vector.extract_strided_slice %3 {offsets = [2, 0, 0], sizes = [1, 4, 128], strides = [1, 1, 1]} : vector<4x4x128xf32> to vector<1x4x128xf32>
    %267 = vector.shape_cast %266 : vector<1x4x128xf32> to vector<4x128xf32>
    %268 = vector.broadcast %265 : f32 to vector<4x128xf32>
    %269 = arith.mulf %268, %267 : vector<4x128xf32>
    %270 = arith.addf %264, %269 : vector<4x128xf32>
    %c4_93 = arith.constant 4 : index
    %c3_94 = arith.constant 3 : index
    %271 = memref.load %arg3[%c4_93, %c3_94] : memref<8x4xf32, #tpu.memory_space<smem>>
    %272 = vector.extract_strided_slice %3 {offsets = [3, 0, 0], sizes = [1, 4, 128], strides = [1, 1, 1]} : vector<4x4x128xf32> to vector<1x4x128xf32>
    %273 = vector.shape_cast %272 : vector<1x4x128xf32> to vector<4x128xf32>
    %274 = vector.broadcast %271 : f32 to vector<4x128xf32>
    %275 = arith.mulf %274, %273 : vector<4x128xf32>
    %276 = arith.addf %270, %275 : vector<4x128xf32>
    %c4_95 = arith.constant 4 : index
    %277 = memref.load %arg4[%c4_95] : memref<8xf32, #tpu.memory_space<smem>>
    %cst_96 = arith.constant 0.000000e+00 : f32
    %278 = vector.broadcast %cst_96 : f32 to vector<4x128xf32>
    %279 = arith.maximumf %276, %278 : vector<4x128xf32>
    %280 = vector.broadcast %277 : f32 to vector<4x128xf32>
    %281 = arith.mulf %280, %279 : vector<4x128xf32>
    %282 = arith.addf %226, %281 : vector<4x128xf32>
    %c5 = arith.constant 5 : index
    %283 = memref.load %arg5[%c5] : memref<8xf32, #tpu.memory_space<smem>>
    %c5_97 = arith.constant 5 : index
    %c0_98 = arith.constant 0 : index
    %284 = memref.load %arg2[%c5_97, %c0_98] : memref<8x4xf32, #tpu.memory_space<smem>>
    %285 = vector.extract_strided_slice %1 {offsets = [0, 0, 0], sizes = [1, 4, 128], strides = [1, 1, 1]} : vector<4x4x128xf32> to vector<1x4x128xf32>
    %286 = vector.shape_cast %285 : vector<1x4x128xf32> to vector<4x128xf32>
    %287 = vector.broadcast %284 : f32 to vector<4x128xf32>
    %288 = arith.mulf %287, %286 : vector<4x128xf32>
    %289 = vector.broadcast %283 : f32 to vector<4x128xf32>
    %290 = arith.addf %289, %288 : vector<4x128xf32>
    %c5_99 = arith.constant 5 : index
    %c1_100 = arith.constant 1 : index
    %291 = memref.load %arg2[%c5_99, %c1_100] : memref<8x4xf32, #tpu.memory_space<smem>>
    %292 = vector.extract_strided_slice %1 {offsets = [1, 0, 0], sizes = [1, 4, 128], strides = [1, 1, 1]} : vector<4x4x128xf32> to vector<1x4x128xf32>
    %293 = vector.shape_cast %292 : vector<1x4x128xf32> to vector<4x128xf32>
    %294 = vector.broadcast %291 : f32 to vector<4x128xf32>
    %295 = arith.mulf %294, %293 : vector<4x128xf32>
    %296 = arith.addf %290, %295 : vector<4x128xf32>
    %c5_101 = arith.constant 5 : index
    %c2_102 = arith.constant 2 : index
    %297 = memref.load %arg2[%c5_101, %c2_102] : memref<8x4xf32, #tpu.memory_space<smem>>
    %298 = vector.extract_strided_slice %1 {offsets = [2, 0, 0], sizes = [1, 4, 128], strides = [1, 1, 1]} : vector<4x4x128xf32> to vector<1x4x128xf32>
    %299 = vector.shape_cast %298 : vector<1x4x128xf32> to vector<4x128xf32>
    %300 = vector.broadcast %297 : f32 to vector<4x128xf32>
    %301 = arith.mulf %300, %299 : vector<4x128xf32>
    %302 = arith.addf %296, %301 : vector<4x128xf32>
    %c5_103 = arith.constant 5 : index
    %c3_104 = arith.constant 3 : index
    %303 = memref.load %arg2[%c5_103, %c3_104] : memref<8x4xf32, #tpu.memory_space<smem>>
    %304 = vector.extract_strided_slice %1 {offsets = [3, 0, 0], sizes = [1, 4, 128], strides = [1, 1, 1]} : vector<4x4x128xf32> to vector<1x4x128xf32>
    %305 = vector.shape_cast %304 : vector<1x4x128xf32> to vector<4x128xf32>
    %306 = vector.broadcast %303 : f32 to vector<4x128xf32>
    %307 = arith.mulf %306, %305 : vector<4x128xf32>
    %308 = arith.addf %302, %307 : vector<4x128xf32>
    %c5_105 = arith.constant 5 : index
    %c0_106 = arith.constant 0 : index
    %309 = memref.load %arg3[%c5_105, %c0_106] : memref<8x4xf32, #tpu.memory_space<smem>>
    %310 = vector.extract_strided_slice %3 {offsets = [0, 0, 0], sizes = [1, 4, 128], strides = [1, 1, 1]} : vector<4x4x128xf32> to vector<1x4x128xf32>
    %311 = vector.shape_cast %310 : vector<1x4x128xf32> to vector<4x128xf32>
    %312 = vector.broadcast %309 : f32 to vector<4x128xf32>
    %313 = arith.mulf %312, %311 : vector<4x128xf32>
    %314 = arith.addf %308, %313 : vector<4x128xf32>
    %c5_107 = arith.constant 5 : index
    %c1_108 = arith.constant 1 : index
    %315 = memref.load %arg3[%c5_107, %c1_108] : memref<8x4xf32, #tpu.memory_space<smem>>
    %316 = vector.extract_strided_slice %3 {offsets = [1, 0, 0], sizes = [1, 4, 128], strides = [1, 1, 1]} : vector<4x4x128xf32> to vector<1x4x128xf32>
    %317 = vector.shape_cast %316 : vector<1x4x128xf32> to vector<4x128xf32>
    %318 = vector.broadcast %315 : f32 to vector<4x128xf32>
    %319 = arith.mulf %318, %317 : vector<4x128xf32>
    %320 = arith.addf %314, %319 : vector<4x128xf32>
    %c5_109 = arith.constant 5 : index
    %c2_110 = arith.constant 2 : index
    %321 = memref.load %arg3[%c5_109, %c2_110] : memref<8x4xf32, #tpu.memory_space<smem>>
    %322 = vector.extract_strided_slice %3 {offsets = [2, 0, 0], sizes = [1, 4, 128], strides = [1, 1, 1]} : vector<4x4x128xf32> to vector<1x4x128xf32>
    %323 = vector.shape_cast %322 : vector<1x4x128xf32> to vector<4x128xf32>
    %324 = vector.broadcast %321 : f32 to vector<4x128xf32>
    %325 = arith.mulf %324, %323 : vector<4x128xf32>
    %326 = arith.addf %320, %325 : vector<4x128xf32>
    %c5_111 = arith.constant 5 : index
    %c3_112 = arith.constant 3 : index
    %327 = memref.load %arg3[%c5_111, %c3_112] : memref<8x4xf32, #tpu.memory_space<smem>>
    %328 = vector.extract_strided_slice %3 {offsets = [3, 0, 0], sizes = [1, 4, 128], strides = [1, 1, 1]} : vector<4x4x128xf32> to vector<1x4x128xf32>
    %329 = vector.shape_cast %328 : vector<1x4x128xf32> to vector<4x128xf32>
    %330 = vector.broadcast %327 : f32 to vector<4x128xf32>
    %331 = arith.mulf %330, %329 : vector<4x128xf32>
    %332 = arith.addf %326, %331 : vector<4x128xf32>
    %c5_113 = arith.constant 5 : index
    %333 = memref.load %arg4[%c5_113] : memref<8xf32, #tpu.memory_space<smem>>
    %cst_114 = arith.constant 0.000000e+00 : f32
    %334 = vector.broadcast %cst_114 : f32 to vector<4x128xf32>
    %335 = arith.maximumf %332, %334 : vector<4x128xf32>
    %336 = vector.broadcast %333 : f32 to vector<4x128xf32>
    %337 = arith.mulf %336, %335 : vector<4x128xf32>
    %338 = arith.addf %282, %337 : vector<4x128xf32>
    %c6 = arith.constant 6 : index
    %339 = memref.load %arg5[%c6] : memref<8xf32, #tpu.memory_space<smem>>
    %c6_115 = arith.constant 6 : index
    %c0_116 = arith.constant 0 : index
    %340 = memref.load %arg2[%c6_115, %c0_116] : memref<8x4xf32, #tpu.memory_space<smem>>
    %341 = vector.extract_strided_slice %1 {offsets = [0, 0, 0], sizes = [1, 4, 128], strides = [1, 1, 1]} : vector<4x4x128xf32> to vector<1x4x128xf32>
    %342 = vector.shape_cast %341 : vector<1x4x128xf32> to vector<4x128xf32>
    %343 = vector.broadcast %340 : f32 to vector<4x128xf32>
    %344 = arith.mulf %343, %342 : vector<4x128xf32>
    %345 = vector.broadcast %339 : f32 to vector<4x128xf32>
    %346 = arith.addf %345, %344 : vector<4x128xf32>
    %c6_117 = arith.constant 6 : index
    %c1_118 = arith.constant 1 : index
    %347 = memref.load %arg2[%c6_117, %c1_118] : memref<8x4xf32, #tpu.memory_space<smem>>
    %348 = vector.extract_strided_slice %1 {offsets = [1, 0, 0], sizes = [1, 4, 128], strides = [1, 1, 1]} : vector<4x4x128xf32> to vector<1x4x128xf32>
    %349 = vector.shape_cast %348 : vector<1x4x128xf32> to vector<4x128xf32>
    %350 = vector.broadcast %347 : f32 to vector<4x128xf32>
    %351 = arith.mulf %350, %349 : vector<4x128xf32>
    %352 = arith.addf %346, %351 : vector<4x128xf32>
    %c6_119 = arith.constant 6 : index
    %c2_120 = arith.constant 2 : index
    %353 = memref.load %arg2[%c6_119, %c2_120] : memref<8x4xf32, #tpu.memory_space<smem>>
    %354 = vector.extract_strided_slice %1 {offsets = [2, 0, 0], sizes = [1, 4, 128], strides = [1, 1, 1]} : vector<4x4x128xf32> to vector<1x4x128xf32>
    %355 = vector.shape_cast %354 : vector<1x4x128xf32> to vector<4x128xf32>
    %356 = vector.broadcast %353 : f32 to vector<4x128xf32>
    %357 = arith.mulf %356, %355 : vector<4x128xf32>
    %358 = arith.addf %352, %357 : vector<4x128xf32>
    %c6_121 = arith.constant 6 : index
    %c3_122 = arith.constant 3 : index
    %359 = memref.load %arg2[%c6_121, %c3_122] : memref<8x4xf32, #tpu.memory_space<smem>>
    %360 = vector.extract_strided_slice %1 {offsets = [3, 0, 0], sizes = [1, 4, 128], strides = [1, 1, 1]} : vector<4x4x128xf32> to vector<1x4x128xf32>
    %361 = vector.shape_cast %360 : vector<1x4x128xf32> to vector<4x128xf32>
    %362 = vector.broadcast %359 : f32 to vector<4x128xf32>
    %363 = arith.mulf %362, %361 : vector<4x128xf32>
    %364 = arith.addf %358, %363 : vector<4x128xf32>
    %c6_123 = arith.constant 6 : index
    %c0_124 = arith.constant 0 : index
    %365 = memref.load %arg3[%c6_123, %c0_124] : memref<8x4xf32, #tpu.memory_space<smem>>
    %366 = vector.extract_strided_slice %3 {offsets = [0, 0, 0], sizes = [1, 4, 128], strides = [1, 1, 1]} : vector<4x4x128xf32> to vector<1x4x128xf32>
    %367 = vector.shape_cast %366 : vector<1x4x128xf32> to vector<4x128xf32>
    %368 = vector.broadcast %365 : f32 to vector<4x128xf32>
    %369 = arith.mulf %368, %367 : vector<4x128xf32>
    %370 = arith.addf %364, %369 : vector<4x128xf32>
    %c6_125 = arith.constant 6 : index
    %c1_126 = arith.constant 1 : index
    %371 = memref.load %arg3[%c6_125, %c1_126] : memref<8x4xf32, #tpu.memory_space<smem>>
    %372 = vector.extract_strided_slice %3 {offsets = [1, 0, 0], sizes = [1, 4, 128], strides = [1, 1, 1]} : vector<4x4x128xf32> to vector<1x4x128xf32>
    %373 = vector.shape_cast %372 : vector<1x4x128xf32> to vector<4x128xf32>
    %374 = vector.broadcast %371 : f32 to vector<4x128xf32>
    %375 = arith.mulf %374, %373 : vector<4x128xf32>
    %376 = arith.addf %370, %375 : vector<4x128xf32>
    %c6_127 = arith.constant 6 : index
    %c2_128 = arith.constant 2 : index
    %377 = memref.load %arg3[%c6_127, %c2_128] : memref<8x4xf32, #tpu.memory_space<smem>>
    %378 = vector.extract_strided_slice %3 {offsets = [2, 0, 0], sizes = [1, 4, 128], strides = [1, 1, 1]} : vector<4x4x128xf32> to vector<1x4x128xf32>
    %379 = vector.shape_cast %378 : vector<1x4x128xf32> to vector<4x128xf32>
    %380 = vector.broadcast %377 : f32 to vector<4x128xf32>
    %381 = arith.mulf %380, %379 : vector<4x128xf32>
    %382 = arith.addf %376, %381 : vector<4x128xf32>
    %c6_129 = arith.constant 6 : index
    %c3_130 = arith.constant 3 : index
    %383 = memref.load %arg3[%c6_129, %c3_130] : memref<8x4xf32, #tpu.memory_space<smem>>
    %384 = vector.extract_strided_slice %3 {offsets = [3, 0, 0], sizes = [1, 4, 128], strides = [1, 1, 1]} : vector<4x4x128xf32> to vector<1x4x128xf32>
    %385 = vector.shape_cast %384 : vector<1x4x128xf32> to vector<4x128xf32>
    %386 = vector.broadcast %383 : f32 to vector<4x128xf32>
    %387 = arith.mulf %386, %385 : vector<4x128xf32>
    %388 = arith.addf %382, %387 : vector<4x128xf32>
    %c6_131 = arith.constant 6 : index
    %389 = memref.load %arg4[%c6_131] : memref<8xf32, #tpu.memory_space<smem>>
    %cst_132 = arith.constant 0.000000e+00 : f32
    %390 = vector.broadcast %cst_132 : f32 to vector<4x128xf32>
    %391 = arith.maximumf %388, %390 : vector<4x128xf32>
    %392 = vector.broadcast %389 : f32 to vector<4x128xf32>
    %393 = arith.mulf %392, %391 : vector<4x128xf32>
    %394 = arith.addf %338, %393 : vector<4x128xf32>
    %c7 = arith.constant 7 : index
    %395 = memref.load %arg5[%c7] : memref<8xf32, #tpu.memory_space<smem>>
    %c7_133 = arith.constant 7 : index
    %c0_134 = arith.constant 0 : index
    %396 = memref.load %arg2[%c7_133, %c0_134] : memref<8x4xf32, #tpu.memory_space<smem>>
    %397 = vector.extract_strided_slice %1 {offsets = [0, 0, 0], sizes = [1, 4, 128], strides = [1, 1, 1]} : vector<4x4x128xf32> to vector<1x4x128xf32>
    %398 = vector.shape_cast %397 : vector<1x4x128xf32> to vector<4x128xf32>
    %399 = vector.broadcast %396 : f32 to vector<4x128xf32>
    %400 = arith.mulf %399, %398 : vector<4x128xf32>
    %401 = vector.broadcast %395 : f32 to vector<4x128xf32>
    %402 = arith.addf %401, %400 : vector<4x128xf32>
    %c7_135 = arith.constant 7 : index
    %c1_136 = arith.constant 1 : index
    %403 = memref.load %arg2[%c7_135, %c1_136] : memref<8x4xf32, #tpu.memory_space<smem>>
    %404 = vector.extract_strided_slice %1 {offsets = [1, 0, 0], sizes = [1, 4, 128], strides = [1, 1, 1]} : vector<4x4x128xf32> to vector<1x4x128xf32>
    %405 = vector.shape_cast %404 : vector<1x4x128xf32> to vector<4x128xf32>
    %406 = vector.broadcast %403 : f32 to vector<4x128xf32>
    %407 = arith.mulf %406, %405 : vector<4x128xf32>
    %408 = arith.addf %402, %407 : vector<4x128xf32>
    %c7_137 = arith.constant 7 : index
    %c2_138 = arith.constant 2 : index
    %409 = memref.load %arg2[%c7_137, %c2_138] : memref<8x4xf32, #tpu.memory_space<smem>>
    %410 = vector.extract_strided_slice %1 {offsets = [2, 0, 0], sizes = [1, 4, 128], strides = [1, 1, 1]} : vector<4x4x128xf32> to vector<1x4x128xf32>
    %411 = vector.shape_cast %410 : vector<1x4x128xf32> to vector<4x128xf32>
    %412 = vector.broadcast %409 : f32 to vector<4x128xf32>
    %413 = arith.mulf %412, %411 : vector<4x128xf32>
    %414 = arith.addf %408, %413 : vector<4x128xf32>
    %c7_139 = arith.constant 7 : index
    %c3_140 = arith.constant 3 : index
    %415 = memref.load %arg2[%c7_139, %c3_140] : memref<8x4xf32, #tpu.memory_space<smem>>
    %416 = vector.extract_strided_slice %1 {offsets = [3, 0, 0], sizes = [1, 4, 128], strides = [1, 1, 1]} : vector<4x4x128xf32> to vector<1x4x128xf32>
    %417 = vector.shape_cast %416 : vector<1x4x128xf32> to vector<4x128xf32>
    %418 = vector.broadcast %415 : f32 to vector<4x128xf32>
    %419 = arith.mulf %418, %417 : vector<4x128xf32>
    %420 = arith.addf %414, %419 : vector<4x128xf32>
    %c7_141 = arith.constant 7 : index
    %c0_142 = arith.constant 0 : index
    %421 = memref.load %arg3[%c7_141, %c0_142] : memref<8x4xf32, #tpu.memory_space<smem>>
    %422 = vector.extract_strided_slice %3 {offsets = [0, 0, 0], sizes = [1, 4, 128], strides = [1, 1, 1]} : vector<4x4x128xf32> to vector<1x4x128xf32>
    %423 = vector.shape_cast %422 : vector<1x4x128xf32> to vector<4x128xf32>
    %424 = vector.broadcast %421 : f32 to vector<4x128xf32>
    %425 = arith.mulf %424, %423 : vector<4x128xf32>
    %426 = arith.addf %420, %425 : vector<4x128xf32>
    %c7_143 = arith.constant 7 : index
    %c1_144 = arith.constant 1 : index
    %427 = memref.load %arg3[%c7_143, %c1_144] : memref<8x4xf32, #tpu.memory_space<smem>>
    %428 = vector.extract_strided_slice %3 {offsets = [1, 0, 0], sizes = [1, 4, 128], strides = [1, 1, 1]} : vector<4x4x128xf32> to vector<1x4x128xf32>
    %429 = vector.shape_cast %428 : vector<1x4x128xf32> to vector<4x128xf32>
    %430 = vector.broadcast %427 : f32 to vector<4x128xf32>
    %431 = arith.mulf %430, %429 : vector<4x128xf32>
    %432 = arith.addf %426, %431 : vector<4x128xf32>
    %c7_145 = arith.constant 7 : index
    %c2_146 = arith.constant 2 : index
    %433 = memref.load %arg3[%c7_145, %c2_146] : memref<8x4xf32, #tpu.memory_space<smem>>
    %434 = vector.extract_strided_slice %3 {offsets = [2, 0, 0], sizes = [1, 4, 128], strides = [1, 1, 1]} : vector<4x4x128xf32> to vector<1x4x128xf32>
    %435 = vector.shape_cast %434 : vector<1x4x128xf32> to vector<4x128xf32>
    %436 = vector.broadcast %433 : f32 to vector<4x128xf32>
    %437 = arith.mulf %436, %435 : vector<4x128xf32>
    %438 = arith.addf %432, %437 : vector<4x128xf32>
    %c7_147 = arith.constant 7 : index
    %c3_148 = arith.constant 3 : index
    %439 = memref.load %arg3[%c7_147, %c3_148] : memref<8x4xf32, #tpu.memory_space<smem>>
    %440 = vector.extract_strided_slice %3 {offsets = [3, 0, 0], sizes = [1, 4, 128], strides = [1, 1, 1]} : vector<4x4x128xf32> to vector<1x4x128xf32>
    %441 = vector.shape_cast %440 : vector<1x4x128xf32> to vector<4x128xf32>
    %442 = vector.broadcast %439 : f32 to vector<4x128xf32>
    %443 = arith.mulf %442, %441 : vector<4x128xf32>
    %444 = arith.addf %438, %443 : vector<4x128xf32>
    %c7_149 = arith.constant 7 : index
    %445 = memref.load %arg4[%c7_149] : memref<8xf32, #tpu.memory_space<smem>>
    %cst_150 = arith.constant 0.000000e+00 : f32
    %446 = vector.broadcast %cst_150 : f32 to vector<4x128xf32>
    %447 = arith.maximumf %444, %446 : vector<4x128xf32>
    %448 = vector.broadcast %445 : f32 to vector<4x128xf32>
    %449 = arith.mulf %448, %447 : vector<4x128xf32>
    %450 = arith.addf %394, %449 : vector<4x128xf32>
    %c0_151 = arith.constant 0 : index
    %451 = memref.load %arg6[%c0_151] : memref<1xf32, #tpu.memory_space<smem>>
    %452 = vector.broadcast %451 : f32 to vector<4x128xf32>
    %453 = arith.addf %450, %452 : vector<4x128xf32>
    %454 = arith.negf %453 : vector<4x128xf32>
    %455 = math.exp %454 : vector<4x128xf32>
    %cst_152 = arith.constant 1.000000e+00 : f32
    %456 = vector.broadcast %cst_152 : f32 to vector<4x128xf32>
    %457 = arith.addf %456, %455 : vector<4x128xf32>
    %458 = arith.divf %456, %457 : vector<4x128xf32>
    %459 = vector.shape_cast %458 : vector<4x128xf32> to vector<1x4x128xf32>
    %460 = vector.broadcast %459 : vector<1x4x128xf32> to vector<4x4x128xf32>
    %461 = arith.mulf %3, %460 : vector<4x4x128xf32>
    %c0_153 = arith.constant 0 : index
    %c0_154 = arith.constant 0 : index
    %c0_155 = arith.constant 0 : index
    %c0_156 = arith.constant 0 : index
    %462 = vector.load %arg9[%c0_153, %c0_154, %c0_155, %c0_156] : memref<1x4x4x128xf32, #tpu.memory_space<vmem>>, vector<1x4x4x128xf32>
    %463 = vector.shape_cast %462 : vector<1x4x4x128xf32> to vector<4x4x128xf32>
    %464 = vector.shape_cast %461 : vector<4x4x128xf32> to vector<1x4x4x128xf32>
    tpu.vector_store %arg9[%c0_153, %c0_154, %c0_155, %c0_156], %464 {strides = array<i32>} : memref<1x4x4x128xf32, #tpu.memory_space<vmem>>, vector<1x4x4x128xf32>,
    return
  }
  func.func @transform_0(%arg0: i32, %arg1: i32) -> (i32, i32) {
    %c0_i32 = arith.constant 0 : i32
    %c0_i32_0 = arith.constant 0 : i32
    %c0_i32_1 = arith.constant 0 : i32
    return %c0_i32, %c0_i32_0 : i32, i32
  }
  func.func @transform_1(%arg0: i32, %arg1: i32) -> (i32, i32) {
    %c0_i32 = arith.constant 0 : i32
    %c0_i32_0 = arith.constant 0 : i32
    %c0_i32_1 = arith.constant 0 : i32
    return %c0_i32, %c0_i32_0 : i32, i32
  }
  func.func @transform_2(%arg0: i32, %arg1: i32) -> i32 {
    %c0_i32 = arith.constant 0 : i32
    %c0_i32_0 = arith.constant 0 : i32
    return %c0_i32 : i32
  }
  func.func @transform_3(%arg0: i32, %arg1: i32) -> i32 {
    %c0_i32 = arith.constant 0 : i32
    %c0_i32_0 = arith.constant 0 : i32
    return %c0_i32 : i32
  }
  func.func @transform_4(%arg0: i32, %arg1: i32) -> i32 {
    %c0_i32 = arith.constant 0 : i32
    %c0_i32_0 = arith.constant 0 : i32
    return %c0_i32 : i32
  }
  func.func @transform_5(%arg0: i32, %arg1: i32) -> (i32, i32, i32, i32) {
    %c0_i32 = arith.constant 0 : i32
    %c0_i32_0 = arith.constant 0 : i32
    %c0_i32_1 = arith.constant 0 : i32
    return %arg0, %c0_i32, %arg1, %c0_i32_0 : i32, i32, i32, i32
  }
  func.func @transform_6(%arg0: i32, %arg1: i32) -> (i32, i32, i32, i32) {
    %c0_i32 = arith.constant 0 : i32
    %c0_i32_0 = arith.constant 0 : i32
    %c0_i32_1 = arith.constant 0 : i32
    return %arg0, %c0_i32, %arg1, %c0_i32_0 : i32, i32, i32, i32
  }
  func.func @transform_7(%arg0: i32, %arg1: i32) -> (i32, i32, i32, i32) {
    %c0_i32 = arith.constant 0 : i32
    %c0_i32_0 = arith.constant 0 : i32
    %c0_i32_1 = arith.constant 0 : i32
    return %arg0, %c0_i32, %arg1, %c0_i32_0 : i32, i32, i32, i32
  }
}

</mosaic_0001>

<llo_original>
// kernel: attention_block_forward.1
$region0: #{attention_block_forward.1}
  #allocation0 [shape = 'u32[]', space=smem, size = 0x4, offset = 0x4, fixed_abs, tag = 'smem constant byte address 0x4 - core index']
  #allocation1 [shape = 'u32[144,128]{1,0:T(1,128)}', space=vmem, size = 0x12000, scoped, tag = 'internal scratch']
  #allocation2 [shape = 'f32[1]{0:T(128)S(6)}', space=smem, size = 0x200, scoped, tag = 'scoped memory for attention_block_forward.1']
  %s0 = inlined_call_operand.vmem [shape: f32[8,4], index: 0, kind: input, shape index: {}]
  %s1 = inlined_call_operand.vmem [shape: f32[8,4], index: 1, kind: input, shape index: {}]
  %s2 = inlined_call_operand.vmem [shape: f32[8], index: 2, kind: input, shape index: {}]
  %s3 = inlined_call_operand.vmem [shape: f32[8], index: 3, kind: input, shape index: {}]
  %s4 = inlined_call_operand.<no memory space> [shape: f32[1], index: 4, kind: input, shape index: {}]
  %s5 = inlined_call_operand.vmem [shape: f32[2,4,4,128], index: 5, kind: input, shape index: {}]
  %s6 = inlined_call_operand.vmem [shape: f32[2,4,4,128], index: 6, kind: input, shape index: {}]
  %s7 = inlined_call_operand.vmem [shape: f32[2,4,4,128], index: 7, kind: output, shape index: {}]
  %s8 = sld [smem:[#allocation0]]
  $region77: #{attention_block_forward.1} parent=0
    _
  %s10 = ssub.s32 1, %s8
  %s11 = scalar_select 0, %s10, %s8
  %12 = sst [smem:[#allocation2]] %s4
  $region1: #{attention_block_forward.1} parent=0
    #allocation3 [shape = 'u8[4096]{0}', space=smem, size = 0x1000, scoped, tag = 'input window, operand 0, single buffered']
    #allocation4 [shape = 's32[2]{0}', space=sflag, size = 0x8, scoped, tag = 'scoped memory for attention_block_forward.1']
    #allocation5 [shape = 'u8[4096]{0}', space=smem, size = 0x1000, scoped, tag = 'input window, operand 1, single buffered']
    #allocation6 [shape = 's32[1]{0}', space=sflag, size = 0x4, scoped, tag = 'scoped memory for attention_block_forward.1']
    #allocation7 [shape = 'u8[512]{0}', space=smem, size = 0x200, scoped, tag = 'input window, operand 2, single buffered']
    #allocation8 [shape = 'u8[512]{0}', space=smem, size = 0x200, scoped, tag = 'input window, operand 3, single buffered']
    #allocation9 [shape = 's32[1]{0}', space=sflag, size = 0x4, scoped, tag = 'scoped memory for attention_block_forward.1']
    %13 = vsyncpa [#allocation4], 0
    %14 = vsyncpa [#allocation6], 0
    %15 = vsyncpa [#allocation9], 0
    loop: start=0, step=1, limit=4
    $region2: #{attention_block_forward.1} parent=1 // loop_pre_header
      _
    $region3: #{attention_block_forward.1} parent=1 // loop_header
      %s17 = sphi 0, %s21
      %p18 = scmp.ge.s32.totalorder %s17, 4
      %s24 = sphi 0, %s36
      %s25 = sphi 0, %s32
      %s26 = sphi 0, %s24
      %s27 = sphi 0, %s25
      %s28 = sphi 0, %s26
      %s29 = sphi 0, %s27
      %s37 = sphi 0, %s37
      %s39 = sphi 0, %s37
      %s40 = sphi 0, %s39
      %s54 = sphi 0, %s40
      %s58 = sphi 0, %s58
      %s60 = sphi 0, %s58
      %s61 = sphi 0, %s60
      %s75 = sphi 0, %s61
      %s79 = sphi 0, %s79
      %s81 = sphi 0, %s79
      %s82 = sphi 0, %s81
      %s96 = sphi 0, %s82
      %s100 = sphi 0, %s100
      %s102 = sphi 0, %s100
      %s103 = sphi 0, %s102
      %s117 = sphi 0, %s103
      %s121 = sphi 0, %s121
      %s123 = sphi 0, %s121
      %s124 = sphi 0, %s123
      %s138 = sphi 0, %s124
      %s146 = sphi 0, %s148
      %s149 = sphi 0, %s146
      %s150 = sphi 0, %s149
      %s166 = sphi 0, %s150
      %s174 = sphi 0, %s176
      %s177 = sphi 0, %s174
      %s178 = sphi 0, %s177
      %s194 = sphi 0, %s178
      %s202 = sphi 0, %s204
      %s205 = sphi 0, %s202
      %s206 = sphi 0, %s205
      %s222 = sphi 0, %s206
    $region4: #{attention_block_forward.1} parent=1 // loop_header_branch
      %20 = sbr.rel (%p18) target = $region8
    $region5: #{attention_block_forward.1} parent=1 // loop_body
      %s22 = ssub.s32 %s17, 1
      %s23 = ssub.s32 %s17, 2
      %s30 = sadd.s32 1, %s25
      %p31 = scmp.ge.s32.totalorder %s30, 1
      %s32 = scalar_select %p31, 0, %s30
      %s33 = sadd.s32 1, %s24
      %s34 = scalar_select %p31, %s33, %s24
      %p35 = scmp.ge.s32.totalorder %s34, 2
      %s36 = scalar_select %p35, 0, %s34
      %s38 = sadd.s32 %s37, 1
      %p41 = scmp.eq.s32.totalorder %s17, 1
      %p42 = scmp.ne.s32.totalorder %s37, %s39
      %p43 = scmp.eq.s32.totalorder %s17, 0
      %p44 = por %p42, %p43
      %p45 = scmp.ne.s32.totalorder %s37, %s39
      %p46 = scmp.eq.s32.totalorder %s22, 1
      %p47 = por %p45, %p46
      %p48 = scmp.ne.s32.totalorder %s39, %s40
      %p49 = scmp.eq.s32.totalorder %s22, 0
      %p50 = por %p48, %p49
      %p51 = scmp.ne.s32.totalorder %s39, %s40
      %p52 = scmp.eq.s32.totalorder %s23, 1
      %p53 = por %p51, %p52
      %p55 = scmp.ne.s32.totalorder %s40, %s54
      %p56 = scmp.eq.s32.totalorder %s23, 0
      %p57 = por %p55, %p56
      %s59 = sadd.s32 %s58, 1
      %p62 = scmp.eq.s32.totalorder %s17, 1
      %p63 = scmp.ne.s32.totalorder %s58, %s60
      %p64 = scmp.eq.s32.totalorder %s17, 0
      %p65 = por %p63, %p64
      %p66 = scmp.ne.s32.totalorder %s58, %s60
      %p67 = scmp.eq.s32.totalorder %s22, 1
      %p68 = por %p66, %p67
      %p69 = scmp.ne.s32.totalorder %s60, %s61
      %p70 = scmp.eq.s32.totalorder %s22, 0
      %p71 = por %p69, %p70
      %p72 = scmp.ne.s32.totalorder %s60, %s61
      %p73 = scmp.eq.s32.totalorder %s23, 1
      %p74 = por %p72, %p73
      %p76 = scmp.ne.s32.totalorder %s61, %s75
      %p77 = scmp.eq.s32.totalorder %s23, 0
      %p78 = por %p76, %p77
      %s80 = sadd.s32 %s79, 1
      %p83 = scmp.eq.s32.totalorder %s17, 1
      %p84 = scmp.ne.s32.totalorder %s79, %s81
      %p85 = scmp.eq.s32.totalorder %s17, 0
      %p86 = por %p84, %p85
      %p87 = scmp.ne.s32.totalorder %s79, %s81
      %p88 = scmp.eq.s32.totalorder %s22, 1
      %p89 = por %p87, %p88
      %p90 = scmp.ne.s32.totalorder %s81, %s82
      %p91 = scmp.eq.s32.totalorder %s22, 0
      %p92 = por %p90, %p91
      %p93 = scmp.ne.s32.totalorder %s81, %s82
      %p94 = scmp.eq.s32.totalorder %s23, 1
      %p95 = por %p93, %p94
      %p97 = scmp.ne.s32.totalorder %s82, %s96
      %p98 = scmp.eq.s32.totalorder %s23, 0
      %p99 = por %p97, %p98
      %s101 = sadd.s32 %s100, 1
      %p104 = scmp.eq.s32.totalorder %s17, 1
      %p105 = scmp.ne.s32.totalorder %s100, %s102
      %p106 = scmp.eq.s32.totalorder %s17, 0
      %p107 = por %p105, %p106
      %p108 = scmp.ne.s32.totalorder %s100, %s102
      %p109 = scmp.eq.s32.totalorder %s22, 1
      %p110 = por %p108, %p109
      %p111 = scmp.ne.s32.totalorder %s102, %s103
      %p112 = scmp.eq.s32.totalorder %s22, 0
      %p113 = por %p111, %p112
      %p114 = scmp.ne.s32.totalorder %s102, %s103
      %p115 = scmp.eq.s32.totalorder %s23, 1
      %p116 = por %p114, %p115
      %p118 = scmp.ne.s32.totalorder %s103, %s117
      %p119 = scmp.eq.s32.totalorder %s23, 0
      %p120 = por %p118, %p119
      %s122 = sadd.s32 %s121, 1
      %p125 = scmp.eq.s32.totalorder %s17, 1
      %p126 = scmp.ne.s32.totalorder %s121, %s123
      %p127 = scmp.eq.s32.totalorder %s17, 0
      %p128 = por %p126, %p127
      %p129 = scmp.ne.s32.totalorder %s121, %s123
      %p130 = scmp.eq.s32.totalorder %s22, 1
      %p131 = por %p129, %p130
      %p132 = scmp.ne.s32.totalorder %s123, %s124
      %p133 = scmp.eq.s32.totalorder %s22, 0
      %p134 = por %p132, %p133
      %p135 = scmp.ne.s32.totalorder %s123, %s124
      %p136 = scmp.eq.s32.totalorder %s23, 1
      %p137 = por %p135, %p136
      %p139 = scmp.ne.s32.totalorder %s124, %s138
      %p140 = scmp.eq.s32.totalorder %s23, 0
      %p141 = por %p139, %p140
      %s142 = ssub.s32 %s24, %s36
      %s143 = ssub.s32 %s25, %s32
      %s144 = sor.u32 %s142, %s143
      %p145 = scmp.eq.s32.totalorder %s144, 0
      %s147 = sadd.s32 %s146, 1
      %s148 = scalar_select %p145, %s146, %s147
      %p151 = pneg %p145
      %p152 = scmp.eq.s32.totalorder %s17, 1
      %p153 = por %p151, %p152
      %p154 = scmp.ne.s32.totalorder %s146, %s149
      %p155 = scmp.eq.s32.totalorder %s17, 0
      %p156 = por %p154, %p155
      %p157 = scmp.ne.s32.totalorder %s146, %s149
      %p158 = scmp.eq.s32.totalorder %s22, 1
      %p159 = por %p157, %p158
      %p160 = scmp.ne.s32.totalorder %s149, %s150
      %p161 = scmp.eq.s32.totalorder %s22, 0
      %p162 = por %p160, %p161
      %p163 = scmp.ne.s32.totalorder %s149, %s150
      %p164 = scmp.eq.s32.totalorder %s23, 1
      %p165 = por %p163, %p164
      %p167 = scmp.ne.s32.totalorder %s150, %s166
      %p168 = scmp.eq.s32.totalorder %s23, 0
      %p169 = por %p167, %p168
      %s170 = ssub.s32 %s24, %s36
      %s171 = ssub.s32 %s25, %s32
      %s172 = sor.u32 %s170, %s171
      %p173 = scmp.eq.s32.totalorder %s172, 0
      %s175 = sadd.s32 %s174, 1
      %s176 = scalar_select %p173, %s174, %s175
      %p179 = pneg %p173
      %p180 = scmp.eq.s32.totalorder %s17, 1
      %p181 = por %p179, %p180
      %p182 = scmp.ne.s32.totalorder %s174, %s177
      %p183 = scmp.eq.s32.totalorder %s17, 0
      %p184 = por %p182, %p183
      %p185 = scmp.ne.s32.totalorder %s174, %s177
      %p186 = scmp.eq.s32.totalorder %s22, 1
      %p187 = por %p185, %p186
      %p188 = scmp.ne.s32.totalorder %s177, %s178
      %p189 = scmp.eq.s32.totalorder %s22, 0
      %p190 = por %p188, %p189
      %p191 = scmp.ne.s32.totalorder %s177, %s178
      %p192 = scmp.eq.s32.totalorder %s23, 1
      %p193 = por %p191, %p192
      %p195 = scmp.ne.s32.totalorder %s178, %s194
      %p196 = scmp.eq.s32.totalorder %s23, 0
      %p197 = por %p195, %p196
      %s198 = ssub.s32 %s24, %s36
      %s199 = ssub.s32 %s25, %s32
      %s200 = sor.u32 %s198, %s199
      %p201 = scmp.eq.s32.totalorder %s200, 0
      %s203 = sadd.s32 %s202, 1
      %s204 = scalar_select %p201, %s202, %s203
      %p207 = pneg %p201
      %p208 = scmp.eq.s32.totalorder %s17, 1
      %p209 = por %p207, %p208
      %p210 = scmp.ne.s32.totalorder %s202, %s205
      %p211 = scmp.eq.s32.totalorder %s17, 0
      %p212 = por %p210, %p211
      %p213 = scmp.ne.s32.totalorder %s202, %s205
      %p214 = scmp.eq.s32.totalorder %s22, 1
      %p215 = por %p213, %p214
      %p216 = scmp.ne.s32.totalorder %s205, %s206
      %p217 = scmp.eq.s32.totalorder %s22, 0
      %p218 = por %p216, %p217
      %p219 = scmp.ne.s32.totalorder %s205, %s206
      %p220 = scmp.eq.s32.totalorder %s23, 1
      %p221 = por %p219, %p220
      %p223 = scmp.ne.s32.totalorder %s206, %s222
      %p224 = scmp.eq.s32.totalorder %s23, 0
      %p225 = por %p223, %p224
      %p226 = scmp.le.s32.totalorder 1, %s17
      %p227 = scmp.lt.s32.totalorder %s17, 3
      %p228 = pnand %p226, %p227
      %p229 = pneg %p228
      // Predicated region
      $region9: #{attention_block_forward.1} parent=5 // pred_check
        _
      $region10: #{attention_block_forward.1} parent=5 // pred_check_branch
        %231 = sbr.rel (%p228) target = $region12
      $region11: #{attention_block_forward.1} parent=5 // pred_region
        %s232 = ssub.s32 %s17, 1
        // Predicated region
        $region13: #{attention_block_forward.1} parent=11 // pred_check
          %p233 = pneg %p50
        $region14: #{attention_block_forward.1} parent=11 // pred_check_branch
          %235 = sbr.rel (%p233) target = $region16
        $region15: #{attention_block_forward.1} parent=11 // pred_region
          %s237 = ssub.s32 128, 128
          %238 = vsyncadd [#allocation4], %s237
          %s240 = sshll.u32 %s0, 4
          %s241 = int_to_ptr.vmem [resolvable:$true] %s240
          %243 = dma.vmem_to_smem %s241, 128, [#allocation3], [#allocation4]
        $region16: #{attention_block_forward.1} parent=11 // pred_fallthru
          _
        // Predicated region
        $region17: #{attention_block_forward.1} parent=11 // pred_check
          %p244 = pneg %p71
        $region18: #{attention_block_forward.1} parent=11 // pred_check_branch
          %246 = sbr.rel (%p244) target = $region20
        $region19: #{attention_block_forward.1} parent=11 // pred_region
          %s248 = ssub.s32 128, 128
          %249 = vsyncadd [#allocation6], %s248
          %s251 = sshll.u32 %s1, 4
          %s252 = int_to_ptr.vmem [resolvable:$true] %s251
          %254 = dma.vmem_to_smem %s252, 128, [#allocation5], [#allocation6]
        $region20: #{attention_block_forward.1} parent=11 // pred_fallthru
          _
        // Predicated region
        $region21: #{attention_block_forward.1} parent=11 // pred_check
          %p255 = pneg %p92
        $region22: #{attention_block_forward.1} parent=11 // pred_check_branch
          %257 = sbr.rel (%p255) target = $region24
        $region23: #{attention_block_forward.1} parent=11 // pred_region
          %s259 = ssub.s32 16, 16
          %260 = vsyncadd [#allocation6], %s259
          %s262 = sshll.u32 %s2, 4
          %s263 = int_to_ptr.vmem [resolvable:$true] %s262
          %265 = dma.vmem_to_smem %s263, 16, [#allocation7], [#allocation6]
        $region24: #{attention_block_forward.1} parent=11 // pred_fallthru
          _
        // Predicated region
        $region25: #{attention_block_forward.1} parent=11 // pred_check
          %p266 = pneg %p113
        $region26: #{attention_block_forward.1} parent=11 // pred_check_branch
          %268 = sbr.rel (%p266) target = $region28
        $region27: #{attention_block_forward.1} parent=11 // pred_region
          %s270 = ssub.s32 16, 16
          %271 = vsyncadd [#allocation9], %s270
          %s273 = sshll.u32 %s3, 4
          %s274 = int_to_ptr.vmem [resolvable:$true] %s273
          %276 = dma.vmem_to_smem %s274, 16, [#allocation8], [#allocation9]
        $region28: #{attention_block_forward.1} parent=11 // pred_fallthru
          _
        // Predicated region
        $region29: #{attention_block_forward.1} parent=11 // pred_check
          %p277 = pneg %p134
        $region30: #{attention_block_forward.1} parent=11 // pred_check_branch
          %279 = sbr.rel (%p277) target = $region32
        $region31: #{attention_block_forward.1} parent=11 // pred_region
          _
        $region32: #{attention_block_forward.1} parent=11 // pred_fallthru
          _
      $region12: #{attention_block_forward.1} parent=5 // pred_fallthru
        _
      %p280 = scmp.lt.s32.totalorder %s17, 2
      // Predicated region
      $region33: #{attention_block_forward.1} parent=5 // pred_check
        %p281 = pneg %p280
      $region34: #{attention_block_forward.1} parent=5 // pred_check_branch
        %283 = sbr.rel (%p281) target = $region36
      $region35: #{attention_block_forward.1} parent=5 // pred_region
        // Predicated region
        $region37: #{attention_block_forward.1} parent=35 // pred_check
          %p284 = pneg %p156
        $region38: #{attention_block_forward.1} parent=35 // pred_check_branch
          %286 = sbr.rel (%p284) target = $region40
        $region39: #{attention_block_forward.1} parent=35 // pred_region
          %p287 = scmp.lt.s32.totalorder %s24, 1
          %s288 = scalar_select %p287, %s24, 1
          %p289 = scmp.lt.s32.totalorder %s25, 0
          %s290 = scalar_select %p289, %s25, 0
          %s291 = smul.addr %s288, 4
          %s292 = sadd.s32 %s290, %s291
          %s293 = smul.addr %s292, 4
          %s294 = scalar_lea.vmem %s5, %s293
        $region40: #{attention_block_forward.1} parent=35 // pred_fallthru
          _
        // Predicated region
        $region41: #{attention_block_forward.1} parent=35 // pred_check
          %p295 = pneg %p184
        $region42: #{attention_block_forward.1} parent=35 // pred_check_branch
          %297 = sbr.rel (%p295) target = $region44
        $region43: #{attention_block_forward.1} parent=35 // pred_region
          %p298 = scmp.lt.s32.totalorder %s24, 1
          %s299 = scalar_select %p298, %s24, 1
          %p300 = scmp.lt.s32.totalorder %s25, 0
          %s301 = scalar_select %p300, %s25, 0
          %s302 = smul.addr %s299, 4
          %s303 = sadd.s32 %s301, %s302
          %s304 = smul.addr %s303, 4
          %s305 = scalar_lea.vmem %s6, %s304
        $region44: #{attention_block_forward.1} parent=35 // pred_fallthru
          _
      $region36: #{attention_block_forward.1} parent=5 // pred_fallthru
        _
      %p306 = scmp.le.s32.totalorder 1, %s17
      %p307 = scmp.lt.s32.totalorder %s17, 3
      %p308 = pnand %p306, %p307
      %p309 = pneg %p308
      // Predicated region
      $region45: #{attention_block_forward.1} parent=5 // pred_check
        _
      $region46: #{attention_block_forward.1} parent=5 // pred_check_branch
        %311 = sbr.rel (%p308) target = $region48
      $region47: #{attention_block_forward.1} parent=5 // pred_region
        %s312 = ssub.s32 %s17, 1
        // Predicated region
        $region49: #{attention_block_forward.1} parent=47 // pred_check
          %p313 = pneg %p50
        $region50: #{attention_block_forward.1} parent=47 // pred_check_branch
          %315 = sbr.rel (%p313) target = $region52
        $region51: #{attention_block_forward.1} parent=47 // pred_region
          %316 = dma.done [#allocation4], 128
        $region52: #{attention_block_forward.1} parent=47 // pred_fallthru
          _
        // Predicated region
        $region53: #{attention_block_forward.1} parent=47 // pred_check
          %p317 = pneg %p71
        $region54: #{attention_block_forward.1} parent=47 // pred_check_branch
          %319 = sbr.rel (%p317) target = $region56
        $region55: #{attention_block_forward.1} parent=47 // pred_region
          %320 = dma.done [#allocation6], 128
        $region56: #{attention_block_forward.1} parent=47 // pred_fallthru
          _
        // Predicated region
        $region57: #{attention_block_forward.1} parent=47 // pred_check
          %p321 = pneg %p92
        $region58: #{attention_block_forward.1} parent=47 // pred_check_branch
          %323 = sbr.rel (%p321) target = $region60
        $region59: #{attention_block_forward.1} parent=47 // pred_region
          %324 = dma.done [#allocation6], 16
        $region60: #{attention_block_forward.1} parent=47 // pred_fallthru
          _
        // Predicated region
        $region61: #{attention_block_forward.1} parent=47 // pred_check
          %p325 = pneg %p113
        $region62: #{attention_block_forward.1} parent=47 // pred_check_branch
          %327 = sbr.rel (%p325) target = $region64
        $region63: #{attention_block_forward.1} parent=47 // pred_region
          %328 = dma.done [#allocation9], 16
        $region64: #{attention_block_forward.1} parent=47 // pred_fallthru
          _
        %329 = sfence
        %p330 = pneg %p50
        %p331 = pneg %p47
        %p332 = pneg %p71
        %p333 = pneg %p68
        %p334 = pneg %p92
        %p335 = pneg %p89
        %p336 = pneg %p113
        %p337 = pneg %p110
        %p338 = pneg %p134
        %p339 = pneg %p131
        %p340 = scmp.lt.s32.totalorder %s26, 1
        %s341 = scalar_select %p340, %s26, 1
        %p342 = scmp.lt.s32.totalorder %s27, 0
        %s343 = scalar_select %p342, %s27, 0
        %s344 = smul.addr %s341, 4
        %s345 = sadd.s32 %s343, %s344
        %s346 = smul.addr %s345, 4
        %s347 = scalar_lea.vmem %s5, %s346
        %p348 = pneg %p162
        %p349 = pneg %p159
        %p350 = scmp.lt.s32.totalorder %s26, 1
        %s351 = scalar_select %p350, %s26, 1
        %p352 = scmp.lt.s32.totalorder %s27, 0
        %s353 = scalar_select %p352, %s27, 0
        %s354 = smul.addr %s351, 4
        %s355 = sadd.s32 %s353, %s354
        %s356 = smul.addr %s355, 4
        %s357 = scalar_lea.vmem %s6, %s356
        %p358 = pneg %p190
        %p359 = pneg %p187
        %p360 = pneg %p218
        %p361 = pneg %p215
        %p362 = scmp.lt.s32.totalorder %s26, 1
        %s363 = scalar_select %p362, %s26, 1
        %p364 = scmp.lt.s32.totalorder %s27, 0
        %s365 = scalar_select %p364, %s27, 0
        %s366 = smul.addr %s363, 4
        %s367 = sadd.s32 %s365, %s366
        %s368 = smul.addr %s367, 4
        %s369 = scalar_lea.vmem %s7, %s368
        %p370 = scmp.lt.s32.totalorder %s26, 1
        %s371 = scalar_select %p370, %s26, 1
        %p372 = scmp.lt.s32.totalorder %s27, 0
        %s373 = scalar_select %p372, %s27, 0
        %s374 = smul.addr %s371, 4
        %s375 = sadd.s32 %s373, %s374
        %s376 = smul.addr %s375, 4
        %s377 = scalar_lea.vmem %s5, %s376
        %p378 = scmp.lt.s32.totalorder %s26, 1
        %s379 = scalar_select %p378, %s26, 1
        %p380 = scmp.lt.s32.totalorder %s27, 0
        %s381 = scalar_select %p380, %s27, 0
        %s382 = smul.addr %s379, 4
        %s383 = sadd.s32 %s381, %s382
        %s384 = smul.addr %s383, 4
        %s385 = scalar_lea.vmem %s6, %s384
        %p386 = scmp.lt.s32.totalorder %s26, 1
        %s387 = scalar_select %p386, %s26, 1
        %p388 = scmp.lt.s32.totalorder %s27, 0
        %s389 = scalar_select %p388, %s27, 0
        %s390 = smul.addr %s387, 4
        %s391 = sadd.s32 %s389, %s390
        %s392 = smul.addr %s391, 4
        %s393 = scalar_lea.vmem %s7, %s392
        %v394 = vld [vmem:[%s377] sm:$0xf]
        %v395 = vld [vmem:[%s377 + $0x4] sm:$0xf]
        %v396 = vld [vmem:[%s377 + $0x8] sm:$0xf]
        %v397 = vld [vmem:[%s377 + $0xc] sm:$0xf]
        %v398 = vld [vmem:[%s385] sm:$0xf]
        %v399 = vld [vmem:[%s385 + $0x4] sm:$0xf]
        %v400 = vld [vmem:[%s385 + $0x8] sm:$0xf]
        %v401 = vld [vmem:[%s385 + $0xc] sm:$0xf]
        %s402 = sld [smem:[#allocation8]]
        %s403 = sld [smem:[#allocation3]]
        %v404 = vstv %s403
        %v405 = vmul.f32 %v404, %v394
        %v406 = vstv %s402
        %v407 = vadd.f32 %v406, %v405
        %s408 = sld [smem:[#allocation3 + $0x1]]
        %v409 = vstv %s408
        %v410 = vmul.f32 %v409, %v395
        %v411 = vadd.f32 %v407, %v410
        %s412 = sld [smem:[#allocation3 + $0x2]]
        %v413 = vstv %s412
        %v414 = vmul.f32 %v413, %v396
        %v415 = vadd.f32 %v411, %v414
        %s416 = sld [smem:[#allocation3 + $0x3]]
        %v417 = vstv %s416
        %v418 = vmul.f32 %v417, %v397
        %v419 = vadd.f32 %v415, %v418
        %s420 = sld [smem:[#allocation5]]
        %v421 = vstv %s420
        %v422 = vmul.f32 %v421, %v398
        %v423 = vadd.f32 %v419, %v422
        %s424 = sld [smem:[#allocation5 + $0x1]]
        %v425 = vstv %s424
        %v426 = vmul.f32 %v425, %v399
        %v427 = vadd.f32 %v423, %v426
        %s428 = sld [smem:[#allocation5 + $0x2]]
        %v429 = vstv %s428
        %v430 = vmul.f32 %v429, %v400
        %v431 = vadd.f32 %v427, %v430
        %s432 = sld [smem:[#allocation5 + $0x3]]
        %v433 = vstv %s432
        %v434 = vmul.f32 %v433, %v401
        %v435 = vadd.f32 %v431, %v434
        %s436 = sld [smem:[#allocation7]]
        %v437 = vmax.f32 %v435, 0.0
        %v438 = vstv %s436
        %v439 = vmul.f32 %v438, %v437
        %s440 = sld [smem:[#allocation8 + $0x1]]
        %s441 = sld [smem:[#allocation3 + $0x80]]
        %v442 = vstv %s441
        %v443 = vmul.f32 %v442, %v394
        %v444 = vstv %s440
        %v445 = vadd.f32 %v444, %v443
        %s446 = sld [smem:[#allocation3 + $0x81]]
        %v447 = vstv %s446
        %v448 = vmul.f32 %v447, %v395
        %v449 = vadd.f32 %v445, %v448
        %s450 = sld [smem:[#allocation3 + $0x82]]
        %v451 = vstv %s450
        %v452 = vmul.f32 %v451, %v396
        %v453 = vadd.f32 %v449, %v452
        %s454 = sld [smem:[#allocation3 + $0x83]]
        %v455 = vstv %s454
        %v456 = vmul.f32 %v455, %v397
        %v457 = vadd.f32 %v453, %v456
        %s458 = sld [smem:[#allocation5 + $0x80]]
        %v459 = vstv %s458
        %v460 = vmul.f32 %v459, %v398
        %v461 = vadd.f32 %v457, %v460
        %s462 = sld [smem:[#allocation5 + $0x81]]
        %v463 = vstv %s462
        %v464 = vmul.f32 %v463, %v399
        %v465 = vadd.f32 %v461, %v464
        %s466 = sld [smem:[#allocation5 + $0x82]]
        %v467 = vstv %s466
        %v468 = vmul.f32 %v467, %v400
        %v469 = vadd.f32 %v465, %v468
        %s470 = sld [smem:[#allocation5 + $0x83]]
        %v471 = vstv %s470
        %v472 = vmul.f32 %v471, %v401
        %v473 = vadd.f32 %v469, %v472
        %s474 = sld [smem:[#allocation7 + $0x1]]
        %v475 = vmax.f32 %v473, 0.0
        %v476 = vstv %s474
        %v477 = vmul.f32 %v476, %v475
        %v478 = vadd.f32 %v439, %v477
        %s479 = sld [smem:[#allocation8 + $0x2]]
        %s480 = sld [smem:[#allocation3 + $0x100]]
        %v481 = vstv %s480
        %v482 = vmul.f32 %v481, %v394
        %v483 = vstv %s479
        %v484 = vadd.f32 %v483, %v482
        %s485 = sld [smem:[#allocation3 + $0x101]]
        %v486 = vstv %s485
        %v487 = vmul.f32 %v486, %v395
        %v488 = vadd.f32 %v484, %v487
        %s489 = sld [smem:[#allocation3 + $0x102]]
        %v490 = vstv %s489
        %v491 = vmul.f32 %v490, %v396
        %v492 = vadd.f32 %v488, %v491
        %s493 = sld [smem:[#allocation3 + $0x103]]
        %v494 = vstv %s493
        %v495 = vmul.f32 %v494, %v397
        %v496 = vadd.f32 %v492, %v495
        %s497 = sld [smem:[#allocation5 + $0x100]]
        %v498 = vstv %s497
        %v499 = vmul.f32 %v498, %v398
        %v500 = vadd.f32 %v496, %v499
        %s501 = sld [smem:[#allocation5 + $0x101]]
        %v502 = vstv %s501
        %v503 = vmul.f32 %v502, %v399
        %v504 = vadd.f32 %v500, %v503
        %s505 = sld [smem:[#allocation5 + $0x102]]
        %v506 = vstv %s505
        %v507 = vmul.f32 %v506, %v400
        %v508 = vadd.f32 %v504, %v507
        %s509 = sld [smem:[#allocation5 + $0x103]]
        %v510 = vstv %s509
        %v511 = vmul.f32 %v510, %v401
        %v512 = vadd.f32 %v508, %v511
        %s513 = sld [smem:[#allocation7 + $0x2]]
        %v514 = vmax.f32 %v512, 0.0
        %v515 = vstv %s513
        %v516 = vmul.f32 %v515, %v514
        %v517 = vadd.f32 %v478, %v516
        %s518 = sld [smem:[#allocation8 + $0x3]]
        %s519 = sld [smem:[#allocation3 + $0x180]]
        %v520 = vstv %s519
        %v521 = vmul.f32 %v520, %v394
        %v522 = vstv %s518
        %v523 = vadd.f32 %v522, %v521
        %s524 = sld [smem:[#allocation3 + $0x181]]
        %v525 = vstv %s524
        %v526 = vmul.f32 %v525, %v395
        %v527 = vadd.f32 %v523, %v526
        %s528 = sld [smem:[#allocation3 + $0x182]]
        %v529 = vstv %s528
        %v530 = vmul.f32 %v529, %v396
        %v531 = vadd.f32 %v527, %v530
        %s532 = sld [smem:[#allocation3 + $0x183]]
        %v533 = vstv %s532
        %v534 = vmul.f32 %v533, %v397
        %v535 = vadd.f32 %v531, %v534
        %s536 = sld [smem:[#allocation5 + $0x180]]
        %v537 = vstv %s536
        %v538 = vmul.f32 %v537, %v398
        %v539 = vadd.f32 %v535, %v538
        %s540 = sld [smem:[#allocation5 + $0x181]]
        %v541 = vstv %s540
        %v542 = vmul.f32 %v541, %v399
        %v543 = vadd.f32 %v539, %v542
        %s544 = sld [smem:[#allocation5 + $0x182]]
        %v545 = vstv %s544
        %v546 = vmul.f32 %v545, %v400
        %v547 = vadd.f32 %v543, %v546
        %s548 = sld [smem:[#allocation5 + $0x183]]
        %v549 = vstv %s548
        %v550 = vmul.f32 %v549, %v401
        %v551 = vadd.f32 %v547, %v550
        %s552 = sld [smem:[#allocation7 + $0x3]]
        %v553 = vmax.f32 %v551, 0.0
        %v554 = vstv %s552
        %v555 = vmul.f32 %v554, %v553
        %v556 = vadd.f32 %v517, %v555
        %s557 = sld [smem:[#allocation8 + $0x4]]
        %s558 = sld [smem:[#allocation3 + $0x200]]
        %v559 = vstv %s558
        %v560 = vmul.f32 %v559, %v394
        %v561 = vstv %s557
        %v562 = vadd.f32 %v561, %v560
        %s563 = sld [smem:[#allocation3 + $0x201]]
        %v564 = vstv %s563
        %v565 = vmul.f32 %v564, %v395
        %v566 = vadd.f32 %v562, %v565
        %s567 = sld [smem:[#allocation3 + $0x202]]
        %v568 = vstv %s567
        %v569 = vmul.f32 %v568, %v396
        %v570 = vadd.f32 %v566, %v569
        %s571 = sld [smem:[#allocation3 + $0x203]]
        %v572 = vstv %s571
        %v573 = vmul.f32 %v572, %v397
        %v574 = vadd.f32 %v570, %v573
        %s575 = sld [smem:[#allocation5 + $0x200]]
        %v576 = vstv %s575
        %v577 = vmul.f32 %v576, %v398
        %v578 = vadd.f32 %v574, %v577
        %s579 = sld [smem:[#allocation5 + $0x201]]
        %v580 = vstv %s579
        %v581 = vmul.f32 %v580, %v399
        %v582 = vadd.f32 %v578, %v581
        %s583 = sld [smem:[#allocation5 + $0x202]]
        %v584 = vstv %s583
        %v585 = vmul.f32 %v584, %v400
        %v586 = vadd.f32 %v582, %v585
        %s587 = sld [smem:[#allocation5 + $0x203]]
        %v588 = vstv %s587
        %v589 = vmul.f32 %v588, %v401
        %v590 = vadd.f32 %v586, %v589
        %s591 = sld [smem:[#allocation7 + $0x4]]
        %v592 = vmax.f32 %v590, 0.0
        %v593 = vstv %s591
        %v594 = vmul.f32 %v593, %v592
        %v595 = vadd.f32 %v556, %v594
        %s596 = sld [smem:[#allocation8 + $0x5]]
        %s597 = sld [smem:[#allocation3 + $0x280]]
        %v598 = vstv %s597
        %v599 = vmul.f32 %v598, %v394
        %v600 = vstv %s596
        %v601 = vadd.f32 %v600, %v599
        %s602 = sld [smem:[#allocation3 + $0x281]]
        %v603 = vstv %s602
        %v604 = vmul.f32 %v603, %v395
        %v605 = vadd.f32 %v601, %v604
        %s606 = sld [smem:[#allocation3 + $0x282]]
        %v607 = vstv %s606
        %v608 = vmul.f32 %v607, %v396
        %v609 = vadd.f32 %v605, %v608
        %s610 = sld [smem:[#allocation3 + $0x283]]
        %v611 = vstv %s610
        %v612 = vmul.f32 %v611, %v397
        %v613 = vadd.f32 %v609, %v612
        %s614 = sld [smem:[#allocation5 + $0x280]]
        %v615 = vstv %s614
        %v616 = vmul.f32 %v615, %v398
        %v617 = vadd.f32 %v613, %v616
        %s618 = sld [smem:[#allocation5 + $0x281]]
        %v619 = vstv %s618
        %v620 = vmul.f32 %v619, %v399
        %v621 = vadd.f32 %v617, %v620
        %s622 = sld [smem:[#allocation5 + $0x282]]
        %v623 = vstv %s622
        %v624 = vmul.f32 %v623, %v400
        %v625 = vadd.f32 %v621, %v624
        %s626 = sld [smem:[#allocation5 + $0x283]]
        %v627 = vstv %s626
        %v628 = vmul.f32 %v627, %v401
        %v629 = vadd.f32 %v625, %v628
        %s630 = sld [smem:[#allocation7 + $0x5]]
        %v631 = vmax.f32 %v629, 0.0
        %v632 = vstv %s630
        %v633 = vmul.f32 %v632, %v631
        %v634 = vadd.f32 %v595, %v633
        %s635 = sld [smem:[#allocation8 + $0x6]]
        %s636 = sld [smem:[#allocation3 + $0x300]]
        %v637 = vstv %s636
        %v638 = vmul.f32 %v637, %v394
        %v639 = vstv %s635
        %v640 = vadd.f32 %v639, %v638
        %s641 = sld [smem:[#allocation3 + $0x301]]
        %v642 = vstv %s641
        %v643 = vmul.f32 %v642, %v395
        %v644 = vadd.f32 %v640, %v643
        %s645 = sld [smem:[#allocation3 + $0x302]]
        %v646 = vstv %s645
        %v647 = vmul.f32 %v646, %v396
        %v648 = vadd.f32 %v644, %v647
        %s649 = sld [smem:[#allocation3 + $0x303]]
        %v650 = vstv %s649
        %v651 = vmul.f32 %v650, %v397
        %v652 = vadd.f32 %v648, %v651
        %s653 = sld [smem:[#allocation5 + $0x300]]
        %v654 = vstv %s653
        %v655 = vmul.f32 %v654, %v398
        %v656 = vadd.f32 %v652, %v655
        %s657 = sld [smem:[#allocation5 + $0x301]]
        %v658 = vstv %s657
        %v659 = vmul.f32 %v658, %v399
        %v660 = vadd.f32 %v656, %v659
        %s661 = sld [smem:[#allocation5 + $0x302]]
        %v662 = vstv %s661
        %v663 = vmul.f32 %v662, %v400
        %v664 = vadd.f32 %v660, %v663
        %s665 = sld [smem:[#allocation5 + $0x303]]
        %v666 = vstv %s665
        %v667 = vmul.f32 %v666, %v401
        %v668 = vadd.f32 %v664, %v667
        %s669 = sld [smem:[#allocation7 + $0x6]]
        %v670 = vmax.f32 %v668, 0.0
        %v671 = vstv %s669
        %v672 = vmul.f32 %v671, %v670
        %v673 = vadd.f32 %v634, %v672
        %s674 = sld [smem:[#allocation8 + $0x7]]
        %s675 = sld [smem:[#allocation3 + $0x380]]
        %v676 = vstv %s675
        %v677 = vmul.f32 %v676, %v394
        %v678 = vstv %s674
        %v679 = vadd.f32 %v678, %v677
        %s680 = sld [smem:[#allocation3 + $0x381]]
        %v681 = vstv %s680
        %v682 = vmul.f32 %v681, %v395
        %v683 = vadd.f32 %v679, %v682
        %s684 = sld [smem:[#allocation3 + $0x382]]
        %v685 = vstv %s684
        %v686 = vmul.f32 %v685, %v396
        %v687 = vadd.f32 %v683, %v686
        %s688 = sld [smem:[#allocation3 + $0x383]]
        %v689 = vstv %s688
        %v690 = vmul.f32 %v689, %v397
        %v691 = vadd.f32 %v687, %v690
        %s692 = sld [smem:[#allocation5 + $0x380]]
        %v693 = vstv %s692
        %v694 = vmul.f32 %v693, %v398
        %v695 = vadd.f32 %v691, %v694
        %s696 = sld [smem:[#allocation5 + $0x381]]
        %v697 = vstv %s696
        %v698 = vmul.f32 %v697, %v399
        %v699 = vadd.f32 %v695, %v698
        %s700 = sld [smem:[#allocation5 + $0x382]]
        %v701 = vstv %s700
        %v702 = vmul.f32 %v701, %v400
        %v703 = vadd.f32 %v699, %v702
        %s704 = sld [smem:[#allocation5 + $0x383]]
        %v705 = vstv %s704
        %v706 = vmul.f32 %v705, %v401
        %v707 = vadd.f32 %v703, %v706
        %s708 = sld [smem:[#allocation7 + $0x7]]
        %v709 = vmax.f32 %v707, 0.0
        %v710 = vstv %s708
        %v711 = vmul.f32 %v710, %v709
        %v712 = vadd.f32 %v673, %v711
        %s713 = sld [smem:[#allocation2]]
        %v714 = vstv %s713
        %v715 = vadd.f32 %v712, %v714
        %v716 = vxor.u32 %v715, 2147483648
        %v717 = vmul.f32 %v716, 1.442695
        %v718 = vpow.pop %v717
        %v719 = vadd.f32 %v718, 1.0
        %v720 = vrcp.pop %v719
        %v721 = vmul.f32 1.0, %v720
        %v722 = vmul.f32 %v398, %v721
        %v723 = vmul.f32 %v399, %v721
        %v724 = vmul.f32 %v400, %v721
        %v725 = vmul.f32 %v401, %v721
        %726 = vst [vmem:[%s393] sm:$0xf] %v722
        %727 = vst [vmem:[%s393 + $0x4] sm:$0xf] %v723
        %728 = vst [vmem:[%s393 + $0x8] sm:$0xf] %v724
        %729 = vst [vmem:[%s393 + $0xc] sm:$0xf] %v725
        %p730 = scmp.lt.s32.totalorder %s26, 1
        %s731 = scalar_select %p730, %s26, 1
        %p732 = scmp.lt.s32.totalorder %s27, 0
        %s733 = scalar_select %p732, %s27, 0
        %s734 = smul.addr %s731, 4
        %s735 = sadd.s32 %s733, %s734
        %s736 = smul.addr %s735, 4
        %s737 = scalar_lea.vmem %s7, %s736
        // Predicated region
        $region65: #{attention_block_forward.1} parent=47 // pred_check
          %p738 = pneg %p215
        $region66: #{attention_block_forward.1} parent=47 // pred_check_branch
          %740 = sbr.rel (%p738) target = $region68
        $region67: #{attention_block_forward.1} parent=47 // pred_region
          _
        $region68: #{attention_block_forward.1} parent=47 // pred_fallthru
          _
      $region48: #{attention_block_forward.1} parent=5 // pred_fallthru
        _
      %p741 = scmp.le.s32.totalorder 2, %s17
      // Predicated region
      $region69: #{attention_block_forward.1} parent=5 // pred_check
        %p742 = pneg %p741
      $region70: #{attention_block_forward.1} parent=5 // pred_check_branch
        %744 = sbr.rel (%p742) target = $region72
      $region71: #{attention_block_forward.1} parent=5 // pred_region
        %s745 = ssub.s32 %s17, 2
        // Predicated region
        $region73: #{attention_block_forward.1} parent=71 // pred_check
          %p746 = pneg %p221
        $region74: #{attention_block_forward.1} parent=71 // pred_check_branch
          %748 = sbr.rel (%p746) target = $region76
        $region75: #{attention_block_forward.1} parent=71 // pred_region
          %p749 = scmp.lt.s32.totalorder %s28, 1
          %s750 = scalar_select %p749, %s28, 1
          %p751 = scmp.lt.s32.totalorder %s29, 0
          %s752 = scalar_select %p751, %s29, 0
          %s753 = smul.addr %s750, 4
          %s754 = sadd.s32 %s752, %s753
          %s755 = smul.addr %s754, 4
          %s756 = scalar_lea.vmem %s7, %s755
        $region76: #{attention_block_forward.1} parent=71 // pred_fallthru
          _
      $region72: #{attention_block_forward.1} parent=5 // pred_fallthru
        _
    $region6: #{attention_block_forward.1} parent=1 // loop_footer
      %s21 = sadd.s32 1, %s17
    $region7: #{attention_block_forward.1} parent=1 // loop_footer_branch
      %16 = sbr.rel target = $region3
    $region8: #{attention_block_forward.1} parent=1 // loop_exit
      _
    %757 = vsyncpa [#allocation4], 1
    %s758 = scalar_lea.sflag [#allocation4], 1
    %759 = vsyncpa %s758, 1
    %760 = vsyncpa [#allocation6], 1
    %761 = vsyncpa [#allocation9], 1

</llo_original>
